<compile_context>
chip_gen: v5e
topology: v5e:2x2
jax: 0.10.0
libtpu: 0.0.40
codegen_flags: <defaults>
</compile_context>

<pallas_src>
import functools

import jax
import jax.numpy as jnp
from jax import lax
from jax.experimental import pallas as pl
from jax.experimental.pallas import tpu as pltpu

_MIB = 1024 * 1024


# ----------------------------------------------------------------------------
# Small helpers
# ----------------------------------------------------------------------------
def _supports_bf16_eup():
    """bf16 transcendentals exist on the EUP from v6e onward (not v5e/older)."""
    try:
        kind = jax.devices()[0].device_kind.lower()
    except Exception:  # pragma: no cover - defensive
        return False
    if "tpu" not in kind:
        return False
    return not any(tag in kind for tag in ("v2", "v3", "v4", "v5"))


def _heads_per_group(num_heads, head_dim):
    """#heads whose concatenated (tq, hd) slabs span >=128 lanes and divide H."""
    hpg = min(num_heads, max(1, 128 // max(head_dim, 1)))
    while num_heads % hpg:
        hpg -= 1
    return hpg


def _pick_seq_tile(seq_len, max_tile):
    """Largest multiple-of-8 divisor of seq_len <= max_tile (or seq_len)."""
    if seq_len <= max_tile:
        return seq_len
    t = (max_tile // 8) * 8
    while t >= 8:
        if seq_len % t == 0:
            return t
        t -= 8
    # Fail fast instead of silently materializing a huge (S, S) score tile.
    if seq_len > 4096:
        raise ValueError(
            f"sequence length {seq_len} has no multiple-of-8 tile <= {max_tile}; "
            "pad the sequence to a multiple of 8")
    return seq_len


def _resident_weight_spec(shape, elem_bytes=2):
    """BlockSpec for a weight that stays resident in VMEM for the whole grid.

    The constant index_map means the block is never re-fetched; once the weight
    is large enough for double-buffering to waste real VMEM (>= 1 MiB), request
    a single buffer with pipeline_mode=pl.Buffered(1) (halves the footprint,
    the difference between fitting and not fitting on v7x's 64 MiB VMEM).
    """
    index_map = lambda *_: (0,) * len(shape)
    nbytes = elem_bytes
    for d in shape:
        nbytes *= d
    if nbytes >= 1 * _MIB:
        try:
            return pl.BlockSpec(shape, index_map, pipeline_mode=pl.Buffered(1))
        except TypeError:  # older jax without pipeline_mode
            return pl.BlockSpec(shape, index_map)
    return pl.BlockSpec(shape, index_map)


def _vmem_limit(estimate_bytes):
    # 1.5x headroom for padding / compiler-internal scratch; clamp to sane range.
    return int(min(128 * _MIB, max(32 * _MIB, int(estimate_bytes * 1.5) + 4 * _MIB)))


# ----------------------------------------------------------------------------
# Kernel 1: fused QKV projection (runs once per token)
# ----------------------------------------------------------------------------
def _qkv_proj_kernel(x_ref, w_ref, q_ref, k_ref, v_ref, *, dim):
    # One wide (ts, D) x (D, 3D) MXU matmul; 1/sqrt(head_dim) already folded
    # into the Q columns of w on the host.
    qkv = jnp.dot(x_ref[...], w_ref[...], preferred_element_type=jnp.float32)
    q_ref[...] = qkv[:, 0 * dim:1 * dim].astype(q_ref.dtype)
    k_ref[...] = qkv[:, 1 * dim:2 * dim].astype(k_ref.dtype)
    v_ref[...] = qkv[:, 2 * dim:3 * dim].astype(v_ref.dtype)


# ----------------------------------------------------------------------------
# Kernel 2: flash attention + fused output projection
# ----------------------------------------------------------------------------
def _flash_attn_kernel(q_ref, k_ref, v_ref, wp_ref, o_ref,
                       m_scr, l_scr, acc_scr, *,
                       num_heads, head_dim, heads_per_group, exp_dtype):
    ki = pl.program_id(2)

    @pl.when(ki == 0)
    def _init():
        m_scr[...] = jnp.full_like(m_scr, -jnp.inf)
        l_scr[...] = jnp.zeros_like(l_scr)
        acc_scr[...] = jnp.zeros_like(acc_scr)

    q = q_ref[...]                    # (tq, D) bf16, pre-scaled
    k = k_ref[...]                    # (tk, D) bf16
    v = v_ref[...]                    # (tk, D) bf16
    tq = q.shape[0]

    # Running softmax stats live in a single (tq, H) buffer: read once and
    # written once per kv step (no per-head scratch stores, tiny footprint).
    m_prev = m_scr[...]               # (tq, H) f32
    l_prev = l_scr[...]               # (tq, H) f32

    n_groups = num_heads // heads_per_group
    gw = heads_per_group * head_dim   # group width: >=128 lanes whenever D allows

    m_cols, l_cols = [], []
    for g in range(n_groups):
        pv_cols, alpha_cols = [], []
        for j in range(heads_per_group):
            h = g * heads_per_group + j
            c0 = h * head_dim
            qh = q[:, c0:c0 + head_dim]                        # (tq, hd)
            kh = k[:, c0:c0 + head_dim]                        # (tk, hd)
            vh = v[:, c0:c0 + head_dim]                        # (tk, hd)
            # Contract head_dim directly; no kh.T materialization.
            s = lax.dot_general(qh, kh, (((1,), (1,)), ((), ())),
                                preferred_element_type=jnp.float32)  # (tq, tk)
            m_h = m_prev[:, h:h + 1]
            m_new = jnp.maximum(m_h, jnp.max(s, axis=-1, keepdims=True))
            alpha = jnp.exp(m_h - m_new)                       # (tq, 1) f32
            # exp in bf16 on chips with a bf16 EUP (v6e/v7x); f32 on v5e.
            p = jnp.exp((s - m_new).astype(exp_dtype))         # (tq, tk)
            l_new = alpha * l_prev[:, h:h + 1] + jnp.sum(
                p, axis=-1, keepdims=True, dtype=jnp.float32)
            pv = jnp.dot(p.astype(jnp.bfloat16), vh,
                         preferred_element_type=jnp.float32)   # (tq, hd)
            pv_cols.append(pv)
            alpha_cols.append(jnp.broadcast_to(alpha, (tq, head_dim)))
            m_cols.append(m_new)
            l_cols.append(l_new)
        pv_blk = pv_cols[0] if len(pv_cols) == 1 else jnp.concatenate(pv_cols, axis=-1)
        al_blk = (alpha_cols[0] if len(alpha_cols) == 1
                  else jnp.concatenate(alpha_cols, axis=-1))
        g0 = g * gw
        # One lane-dense read-modify-write per head group instead of per-head
        # sub-128-lane masked stores on the accumulator.
        acc_scr[:, g0:g0 + gw] = al_blk * acc_scr[:, g0:g0 + gw] + pv_blk

    m_scr[...] = m_cols[0] if num_heads == 1 else jnp.concatenate(m_cols, axis=-1)
    l_scr[...] = l_cols[0] if num_heads == 1 else jnp.concatenate(l_cols, axis=-1)

    @pl.when(ki == pl.num_programs(2) - 1)
    def _epilogue():
        # Exact EUP reciprocal (nearly free) keeps closer parity with PyTorch.
        inv_l = pl.reciprocal(l_scr[...], approx=False)        # (tq, H)
        inv_cols = [jnp.broadcast_to(inv_l[:, h:h + 1], (tq, head_dim))
                    for h in range(num_heads)]
        inv_full = inv_cols[0] if num_heads == 1 else jnp.concatenate(inv_cols, axis=-1)
        attn = (acc_scr[...] * inv_full).astype(jnp.bfloat16)  # (tq, D) head-concat
        # Single wide (tq, D) x (D, D) output projection, written once per q tile.
        o_ref[...] = jnp.dot(attn, wp_ref[...],
                             preferred_element_type=jnp.float32).astype(o_ref.dtype)
        # TODO(synk): dropout is a no-op (module default p=0.0 / eval mode).


# ----------------------------------------------------------------------------
# Wrapper
# ----------------------------------------------------------------------------
def memory_efficient_attention(x, w_qkv, w_proj, num_heads, *,
                               q_tile=None, kv_tile=None):
    """Forward pass of MemoryEfficientAttention (use_kernel_attn=False, p=0.0).

    x:      (B, S, D) float32
    w_qkv:  (3*D, D)  -- nn.Linear(dim, 3*dim, bias=False).weight
    w_proj: (D, D)    -- nn.Linear(dim, dim, bias=False).weight
    Wrap the call in jax.jit so the weight transposes/casts are compiled once.
    """
    B, S, D = x.shape
    assert D % num_heads == 0, "dim must be divisible by num_heads"
    hd = D // num_heads
    scale = hd ** (-0.5)
    hpg = _heads_per_group(num_heads, hd)

    # q tile large (fewer kv sweeps / K,V re-reads), kv tile 128 to bound the
    # vreg pressure of the per-head (tq, tk) f32 score tile.
    tq = q_tile or _pick_seq_tile(S, 512)
    tk = kv_tile or _pick_seq_tile(S, 128)
    ts = _pick_seq_tile(S, 512)                 # projection tile
    assert S % tq == 0 and S % tk == 0 and S % ts == 0

    # Weight glue: nn.Linear computes x @ W.T, so transposing w_qkv yields the
    # per-head-concatenated (D, 3D) = [Wq^T | Wk^T | Wv^T].  The softmax scale
    # is folded into the Q columns here (no per-tile multiply in the kernel).
    w_qkv_t = jnp.concatenate(
        [jnp.transpose(w_qkv[:D]) * scale, jnp.transpose(w_qkv[D:])],
        axis=1).astype(jnp.bfloat16)                            # (D, 3D)
    wp_t = jnp.transpose(w_proj).astype(jnp.bfloat16)           # (D, D)
    x_bf = x.astype(jnp.bfloat16)

    exp_dtype = jnp.bfloat16 if _supports_bf16_eup() else jnp.float32

    # ---------------- kernel 1: QKV projection (once per token) -------------
    proj_vmem = (2 * ts * D * 2                 # x blocks (double-buffered)
                 + D * 3 * D * 2                # resident qkv weight
                 + 3 * 2 * ts * D * 2)          # q/k/v output blocks
    proj_cost = pl.CostEstimate(
        flops=2 * B * S * D * 3 * D,
        transcendentals=0,
        bytes_accessed=B * S * D * 2 + 3 * D * D * 2 + 3 * B * S * D * 2)
    q, k, v = pl.pallas_call(
        functools.partial(_qkv_proj_kernel, dim=D),
        out_shape=(jax.ShapeDtypeStruct((B, S, D), jnp.bfloat16),
                   jax.ShapeDtypeStruct((B, S, D), jnp.bfloat16),
                   jax.ShapeDtypeStruct((B, S, D), jnp.bfloat16)),
        grid_spec=pltpu.PrefetchScalarGridSpec(
            num_scalar_prefetch=0,
            grid=(B, S // ts),
            in_specs=[
                pl.BlockSpec((None, ts, D), lambda b, i: (b, i, 0)),
                _resident_weight_spec((D, 3 * D)),
            ],
            out_specs=[
                pl.BlockSpec((None, ts, D), lambda b, i: (b, i, 0)),
                pl.BlockSpec((None, ts, D), lambda b, i: (b, i, 0)),
                pl.BlockSpec((None, ts, D), lambda b, i: (b, i, 0)),
            ]),
        compiler_params=pltpu.CompilerParams(
            dimension_semantics=("parallel", "parallel"),
            vmem_limit_bytes=_vmem_limit(proj_vmem)),
        cost_estimate=proj_cost,
    )(x_bf, w_qkv_t)

    # ---------------- kernel 2: flash attention + output projection ---------
    # TODO(synk): for D >= 2048 on v7x (64 MiB VMEM) stream the (D, D) output
    # projection weight from HBM (memory_space=pl.ANY + emit_pipeline) instead
    # of keeping it resident.
    attn_vmem = (2 * tq * D * 2                 # q blocks
                 + 2 * 2 * tk * D * 2           # k + v blocks
                 + D * D * 2                    # resident projection weight
                 + 2 * tq * D * 4               # f32 output blocks
                 + tq * D * 4                   # accumulator scratch
                 + 2 * tq * max(num_heads, 128) * 4)   # m/l stats (lane padded)
    attn_cost = pl.CostEstimate(
        flops=4 * B * S * S * D + 2 * B * S * D * D,
        transcendentals=B * num_heads * S * S,
        bytes_accessed=(B * S * D * 2 * (1 + 2 * (S // tq))  # q once, k/v per q tile
                        + B * S * D * 4 + D * D * 2))

    kernel = functools.partial(
        _flash_attn_kernel, num_heads=num_heads, head_dim=hd,
        heads_per_group=hpg, exp_dtype=exp_dtype)

    return pl.pallas_call(
        kernel,
        out_shape=jax.ShapeDtypeStruct((B, S, D), x.dtype),
        grid_spec=pltpu.PrefetchScalarGridSpec(
            num_scalar_prefetch=0,
            # INVARIANT: kv axis innermost + "arbitrary" -- the online-softmax
            # state carries across kv steps and the output block ignores ki
            # (written once in the epilogue).  Batch / q-tile axes stay
            # "parallel" for the megacore split.
            # TODO(synk): if B * (S // tq) is tiny or odd, collapse batch and
            # q-tiles into one leading parallel axis for v7x 2-TC balance.
            grid=(B, S // tq, S // tk),
            in_specs=[
                pl.BlockSpec((None, tq, D), lambda b, qi, ki: (b, qi, 0)),
                pl.BlockSpec((None, tk, D), lambda b, qi, ki: (b, ki, 0)),
                pl.BlockSpec((None, tk, D), lambda b, qi, ki: (b, ki, 0)),
                _resident_weight_spec((D, D)),
            ],
            out_specs=pl.BlockSpec((None, tq, D), lambda b, qi, ki: (b, qi, 0)),
            scratch_shapes=[
                pltpu.VMEM((tq, num_heads), jnp.float32),   # running max
                pltpu.VMEM((tq, num_heads), jnp.float32),   # running sum
                pltpu.VMEM((tq, D), jnp.float32),           # head-concat accumulator
            ]),
        compiler_params=pltpu.CompilerParams(
            dimension_semantics=("parallel", "parallel", "arbitrary"),
            vmem_limit_bytes=_vmem_limit(attn_vmem)),
        cost_estimate=attn_cost,
    )(q, k, v, wp_t)


# ----------------------------------------------------------------------------
# Pure-JAX reference (mirrors the PyTorch module's default forward path)
# ----------------------------------------------------------------------------
def _reference_forward(x, w_qkv, w_proj, num_heads):
    B, S, D = x.shape
    hd = D // num_heads
    qkv = x @ w_qkv.T
    qkv = qkv.reshape(B, S, 3, num_heads, hd)
    q, k, v = qkv[:, :, 0], qkv[:, :, 1], qkv[:, :, 2]
    q = q.transpose(0, 2, 1, 3)
    k = k.transpose(0, 2, 1, 3)
    v = v.transpose(0, 2, 1, 3)
    s = jnp.einsum("bhqd,bhkd->bhqk", q, k) * (hd ** (-0.5))
    p = jax.nn.softmax(s, axis=-1)
    o = jnp.einsum("bhqk,bhkd->bhqd", p, v)
    o = o.transpose(0, 2, 1, 3).reshape(B, S, D)
    return o @ w_proj.T


if __name__ == "__main__":
    B, S, D, H = 2, 8, 32, 8  # head_dim = 4

    key = jax.random.PRNGKey(0)
    k_x, k_qkv, k_proj = jax.random.split(key, 3)

    x = jax.random.normal(k_x, (B, S, D), dtype=jnp.float32)
    bound = 1.0 / (D ** 0.5)  # nn.Linear default init range
    w_qkv = jax.random.uniform(k_qkv, (3 * D, D), dtype=jnp.float32,
                               minval=-bound, maxval=bound)
    w_proj = jax.random.uniform(k_proj, (D, D), dtype=jnp.float32,
                                minval=-bound, maxval=bound)

    fwd = jax.jit(memory_efficient_attention,
                  static_argnames=("num_heads", "q_tile", "kv_tile"))
    out = jax.block_until_ready(fwd(x, w_qkv, w_proj, num_heads=H))

    ref = _reference_forward(x, w_qkv, w_proj, H)
    assert out.shape == (B, S, D)
    # bf16 MXU operands => loosened tolerance.
    assert jnp.allclose(out, ref, atol=2e-2, rtol=2e-2), (
        f"max abs err = {jnp.max(jnp.abs(out - ref))}")

    print("KERNEL_OK")
</pallas_src>

<mosaic_0001>
module attributes {stable_mosaic.version = 11 : i64} {
  func.func @_qkv_proj_kernel(%arg0: i32, %arg1: i32, %arg2: memref<1x8x32xbf16, #tpu.memory_space<vmem>>, %arg3: memref<32x96xbf16, #tpu.memory_space<vmem>>, %arg4: memref<1x8x32xbf16, #tpu.memory_space<vmem>>, %arg5: memref<1x8x32xbf16, #tpu.memory_space<vmem>>, %arg6: memref<1x8x32xbf16, #tpu.memory_space<vmem>>) attributes {dimension_semantics = [#tpu.dimension_semantics<parallel>, #tpu.dimension_semantics<parallel>], iteration_bounds = array<i64: 2, 1>, scalar_prefetch = 0 : i64, scratch_operands = 0 : i64, tpu.core_type = #tpu.core_type<tc>, window_params = [{transform_indices = @transform_0, window_bounds = array<i64: 1, 8, 32>}, {pipeline_mode = #tpu.pipeline_mode<synchronous>, transform_indices = @transform_1, window_bounds = array<i64: 32, 96>}, {transform_indices = @transform_2, window_bounds = array<i64: 1, 8, 32>}, {transform_indices = @transform_3, window_bounds = array<i64: 1, 8, 32>}, {transform_indices = @transform_4, window_bounds = array<i64: 1, 8, 32>}]} {
    %c0 = arith.constant 0 : index
    %c0_0 = arith.constant 0 : index
    %c0_1 = arith.constant 0 : index
    %0 = vector.load %arg2[%c0, %c0_0, %c0_1] : memref<1x8x32xbf16, #tpu.memory_space<vmem>>, vector<1x8x32xbf16>
    %1 = vector.shape_cast %0 : vector<1x8x32xbf16> to vector<8x32xbf16>
    %c0_2 = arith.constant 0 : index
    %c0_3 = arith.constant 0 : index
    %2 = vector.load %arg3[%c0_2, %c0_3] : memref<32x96xbf16, #tpu.memory_space<vmem>>, vector<32x96xbf16>
    %cst = arith.constant dense<0.000000e+00> : vector<8x96xf32>
    %3 = tpu.matmul %1, %2, %cst {dimension_numbers = #tpu.dot_dimension_numbers<[1], [0], [0], [1], [0, 0, 1, 1], [], []>} : vector<8x32xbf16>, vector<32x96xbf16>, vector<8x96xf32> -> vector<8x96xf32>
    %4 = vector.extract_strided_slice %3 {offsets = [0, 0], sizes = [8, 32], strides = [1, 1]} : vector<8x96xf32> to vector<8x32xf32>
    %5 = arith.truncf %4 : vector<8x32xf32> to vector<8x32xbf16>
    %c0_4 = arith.constant 0 : index
    %c0_5 = arith.constant 0 : index
    %c0_6 = arith.constant 0 : index
    %6 = vector.load %arg4[%c0_4, %c0_5, %c0_6] : memref<1x8x32xbf16, #tpu.memory_space<vmem>>, vector<1x8x32xbf16>
    %7 = vector.shape_cast %6 : vector<1x8x32xbf16> to vector<8x32xbf16>
    %8 = vector.shape_cast %5 : vector<8x32xbf16> to vector<1x8x32xbf16>
    tpu.vector_store %arg4[%c0_4, %c0_5, %c0_6], %8 {strides = array<i32>} : memref<1x8x32xbf16, #tpu.memory_space<vmem>>, vector<1x8x32xbf16>,
    %9 = vector.extract_strided_slice %3 {offsets = [0, 32], sizes = [8, 32], strides = [1, 1]} : vector<8x96xf32> to vector<8x32xf32>
    %10 = arith.truncf %9 : vector<8x32xf32> to vector<8x32xbf16>
    %c0_7 = arith.constant 0 : index
    %c0_8 = arith.constant 0 : index
    %c0_9 = arith.constant 0 : index
    %11 = vector.load %arg5[%c0_7, %c0_8, %c0_9] : memref<1x8x32xbf16, #tpu.memory_space<vmem>>, vector<1x8x32xbf16>
    %12 = vector.shape_cast %11 : vector<1x8x32xbf16> to vector<8x32xbf16>
    %13 = vector.shape_cast %10 : vector<8x32xbf16> to vector<1x8x32xbf16>
    tpu.vector_store %arg5[%c0_7, %c0_8, %c0_9], %13 {strides = array<i32>} : memref<1x8x32xbf16, #tpu.memory_space<vmem>>, vector<1x8x32xbf16>,
    %14 = vector.extract_strided_slice %3 {offsets = [0, 64], sizes = [8, 32], strides = [1, 1]} : vector<8x96xf32> to vector<8x32xf32>
    %15 = arith.truncf %14 : vector<8x32xf32> to vector<8x32xbf16>
    %c0_10 = arith.constant 0 : index
    %c0_11 = arith.constant 0 : index
    %c0_12 = arith.constant 0 : index
    %16 = vector.load %arg6[%c0_10, %c0_11, %c0_12] : memref<1x8x32xbf16, #tpu.memory_space<vmem>>, vector<1x8x32xbf16>
    %17 = vector.shape_cast %16 : vector<1x8x32xbf16> to vector<8x32xbf16>
    %18 = vector.shape_cast %15 : vector<8x32xbf16> to vector<1x8x32xbf16>
    tpu.vector_store %arg6[%c0_10, %c0_11, %c0_12], %18 {strides = array<i32>} : memref<1x8x32xbf16, #tpu.memory_space<vmem>>, vector<1x8x32xbf16>,
    return
  }
  func.func @transform_0(%arg0: i32, %arg1: i32) -> (i32, i32, i32) {
    %c0_i32 = arith.constant 0 : i32
    %c0_i32_0 = arith.constant 0 : i32
    return %arg0, %arg1, %c0_i32 : i32, i32, i32
  }
  func.func @transform_1(%arg0: i32, %arg1: i32) -> (i32, i32) {
    %c0_i32 = arith.constant 0 : i32
    %c0_i32_0 = arith.constant 0 : i32
    %c0_i32_1 = arith.constant 0 : i32
    return %c0_i32, %c0_i32_0 : i32, i32
  }
  func.func @transform_2(%arg0: i32, %arg1: i32) -> (i32, i32, i32) {
    %c0_i32 = arith.constant 0 : i32
    %c0_i32_0 = arith.constant 0 : i32
    return %arg0, %arg1, %c0_i32 : i32, i32, i32
  }
  func.func @transform_3(%arg0: i32, %arg1: i32) -> (i32, i32, i32) {
    %c0_i32 = arith.constant 0 : i32
    %c0_i32_0 = arith.constant 0 : i32
    return %arg0, %arg1, %c0_i32 : i32, i32, i32
  }
  func.func @transform_4(%arg0: i32, %arg1: i32) -> (i32, i32, i32) {
    %c0_i32 = arith.constant 0 : i32
    %c0_i32_0 = arith.constant 0 : i32
    return %arg0, %arg1, %c0_i32 : i32, i32, i32
  }
}

module attributes {stable_mosaic.version = 11 : i64} {
  func.func @_flash_attn_kernel(%arg0: i32, %arg1: i32, %arg2: i32, %arg3: memref<1x8x32xbf16, #tpu.memory_space<vmem>>, %arg4: memref<1x8x32xbf16, #tpu.memory_space<vmem>>, %arg5: memref<1x8x32xbf16, #tpu.memory_space<vmem>>, %arg6: memref<32x32xbf16, #tpu.memory_space<vmem>>, %arg7: memref<1x8x32xf32, #tpu.memory_space<vmem>>, %arg8: memref<8x8xf32, #tpu.memory_space<vmem>>, %arg9: memref<8x8xf32, #tpu.memory_space<vmem>>, %arg10: memref<8x32xf32, #tpu.memory_space<vmem>>) attributes {dimension_semantics = [#tpu.dimension_semantics<parallel>, #tpu.dimension_semantics<parallel>, #tpu.dimension_semantics<arbitrary>], iteration_bounds = array<i64: 2, 1, 1>, scalar_prefetch = 0 : i64, scratch_operands = 3 : i64, tpu.core_type = #tpu.core_type<tc>, window_params = [{transform_indices = @transform_0, window_bounds = array<i64: 1, 8, 32>}, {transform_indices = @transform_1, window_bounds = array<i64: 1, 8, 32>}, {transform_indices = @transform_2, window_bounds = array<i64: 1, 8, 32>}, {pipeline_mode = #tpu.pipeline_mode<synchronous>, transform_indices = @transform_3, window_bounds = array<i64: 32, 32>}, {transform_indices = @transform_4, window_bounds = array<i64: 1, 8, 32>}]} {
    %c0_i32 = arith.constant 0 : i32
    %0 = arith.cmpi eq, %arg2, %c0_i32 : i32
    %1 = arith.extui %0 : i1 to i32
    %c0_i32_0 = arith.constant 0 : i32
    %2 = arith.cmpi ne, %1, %c0_i32_0 : i32
    scf.if %2 {
      %cst_54 = arith.constant 0xFF800000 : f32
      %200 = vector.broadcast %cst_54 : f32 to vector<8x8xf32>
      %c0_55 = arith.constant 0 : index
      %c0_56 = arith.constant 0 : index
      %201 = vector.load %arg8[%c0_55, %c0_56] : memref<8x8xf32, #tpu.memory_space<vmem>>, vector<8x8xf32>
      tpu.vector_store %arg8[%c0_55, %c0_56], %200 {strides = array<i32>} : memref<8x8xf32, #tpu.memory_space<vmem>>, vector<8x8xf32>,
      %cst_57 = arith.constant 0.000000e+00 : f32
      %202 = vector.broadcast %cst_57 : f32 to vector<8x8xf32>
      %c0_58 = arith.constant 0 : index
      %c0_59 = arith.constant 0 : index
      %203 = vector.load %arg9[%c0_58, %c0_59] : memref<8x8xf32, #tpu.memory_space<vmem>>, vector<8x8xf32>
      tpu.vector_store %arg9[%c0_58, %c0_59], %202 {strides = array<i32>} : memref<8x8xf32, #tpu.memory_space<vmem>>, vector<8x8xf32>,
      %cst_60 = arith.constant 0.000000e+00 : f32
      %204 = vector.broadcast %cst_60 : f32 to vector<8x32xf32>
      %c0_61 = arith.constant 0 : index
      %c0_62 = arith.constant 0 : index
      %205 = vector.load %arg10[%c0_61, %c0_62] : memref<8x32xf32, #tpu.memory_space<vmem>>, vector<8x32xf32>
      tpu.vector_store %arg10[%c0_61, %c0_62], %204 {strides = array<i32>} : memref<8x32xf32, #tpu.memory_space<vmem>>, vector<8x32xf32>,
    } else {
    }
    %c0 = arith.constant 0 : index
    %c0_1 = arith.constant 0 : index
    %c0_2 = arith.constant 0 : index
    %3 = vector.load %arg3[%c0, %c0_1, %c0_2] : memref<1x8x32xbf16, #tpu.memory_space<vmem>>, vector<1x8x32xbf16>
    %4 = vector.shape_cast %3 : vector<1x8x32xbf16> to vector<8x32xbf16>
    %c0_3 = arith.constant 0 : index
    %c0_4 = arith.constant 0 : index
    %c0_5 = arith.constant 0 : index
    %5 = vector.load %arg4[%c0_3, %c0_4, %c0_5] : memref<1x8x32xbf16, #tpu.memory_space<vmem>>, vector<1x8x32xbf16>
    %6 = vector.shape_cast %5 : vector<1x8x32xbf16> to vector<8x32xbf16>
    %c0_6 = arith.constant 0 : index
    %c0_7 = arith.constant 0 : index
    %c0_8 = arith.constant 0 : index
    %7 = vector.load %arg5[%c0_6, %c0_7, %c0_8] : memref<1x8x32xbf16, #tpu.memory_space<vmem>>, vector<1x8x32xbf16>
    %8 = vector.shape_cast %7 : vector<1x8x32xbf16> to vector<8x32xbf16>
    %c0_9 = arith.constant 0 : index
    %c0_10 = arith.constant 0 : index
    %9 = vector.load %arg8[%c0_9, %c0_10] : memref<8x8xf32, #tpu.memory_space<vmem>>, vector<8x8xf32>
    %c0_11 = arith.constant 0 : index
    %c0_12 = arith.constant 0 : index
    %10 = vector.load %arg9[%c0_11, %c0_12] : memref<8x8xf32, #tpu.memory_space<vmem>>, vector<8x8xf32>
    %11 = vector.extract_strided_slice %4 {offsets = [0, 0], sizes = [8, 4], strides = [1, 1]} : vector<8x32xbf16> to vector<8x4xbf16>
    %12 = vector.extract_strided_slice %6 {offsets = [0, 0], sizes = [8, 4], strides = [1, 1]} : vector<8x32xbf16> to vector<8x4xbf16>
    %13 = vector.extract_strided_slice %8 {offsets = [0, 0], sizes = [8, 4], strides = [1, 1]} : vector<8x32xbf16> to vector<8x4xbf16>
    %cst = arith.constant dense<0.000000e+00> : vector<8x8xf32>
    %14 = tpu.matmul %11, %12, %cst {dimension_numbers = #tpu.dot_dimension_numbers<[1], [1], [0], [0], [0, 0, 1, 0], [], []>} : vector<8x4xbf16>, vector<8x4xbf16>, vector<8x8xf32> -> vector<8x8xf32>
    %15 = vector.extract_strided_slice %9 {offsets = [0, 0], sizes = [8, 1], strides = [1, 1]} : vector<8x8xf32> to vector<8x1xf32>
    %cst_13 = arith.constant dense<0xFF800000> : vector<8xf32>
    %16 = vector.multi_reduction <maximumf>, %14, %cst_13 [1] : vector<8x8xf32> to vector<8xf32>
    %17 = vector.shape_cast %16 : vector<8xf32> to vector<8x1xf32>
    %18 = arith.maximumf %15, %17 : vector<8x1xf32>
    %19 = arith.subf %15, %18 : vector<8x1xf32>
    %20 = math.exp %19 : vector<8x1xf32>
    %21 = vector.broadcast %18 : vector<8x1xf32> to vector<8x8xf32>
    %22 = arith.subf %14, %21 : vector<8x8xf32>
    %23 = math.exp %22 : vector<8x8xf32>
    %24 = vector.extract_strided_slice %10 {offsets = [0, 0], sizes = [8, 1], strides = [1, 1]} : vector<8x8xf32> to vector<8x1xf32>
    %25 = arith.mulf %20, %24 : vector<8x1xf32>
    %cst_14 = arith.constant dense<0.000000e+00> : vector<8xf32>
    %26 = vector.multi_reduction <add>, %23, %cst_14 [1] : vector<8x8xf32> to vector<8xf32>
    %27 = vector.shape_cast %26 : vector<8xf32> to vector<8x1xf32>
    %28 = arith.addf %25, %27 : vector<8x1xf32>
    %29 = arith.truncf %23 : vector<8x8xf32> to vector<8x8xbf16>
    %cst_15 = arith.constant dense<0.000000e+00> : vector<8x4xf32>
    %30 = tpu.matmul %29, %13, %cst_15 {dimension_numbers = #tpu.dot_dimension_numbers<[1], [0], [0], [1], [0, 0, 1, 1], [], []>} : vector<8x8xbf16>, vector<8x4xbf16>, vector<8x4xf32> -> vector<8x4xf32>
    %31 = vector.shape_cast %20 : vector<8x1xf32> to vector<8x1xf32>
    %32 = vector.broadcast %31 : vector<8x1xf32> to vector<8x4xf32>
    %33 = vector.extract_strided_slice %4 {offsets = [0, 4], sizes = [8, 4], strides = [1, 1]} : vector<8x32xbf16> to vector<8x4xbf16>
    %34 = vector.extract_strided_slice %6 {offsets = [0, 4], sizes = [8, 4], strides = [1, 1]} : vector<8x32xbf16> to vector<8x4xbf16>
    %35 = vector.extract_strided_slice %8 {offsets = [0, 4], sizes = [8, 4], strides = [1, 1]} : vector<8x32xbf16> to vector<8x4xbf16>
    %cst_16 = arith.constant dense<0.000000e+00> : vector<8x8xf32>
    %36 = tpu.matmul %33, %34, %cst_16 {dimension_numbers = #tpu.dot_dimension_numbers<[1], [1], [0], [0], [0, 0, 1, 0], [], []>} : vector<8x4xbf16>, vector<8x4xbf16>, vector<8x8xf32> -> vector<8x8xf32>
    %37 = vector.extract_strided_slice %9 {offsets = [0, 1], sizes = [8, 1], strides = [1, 1]} : vector<8x8xf32> to vector<8x1xf32>
    %cst_17 = arith.constant dense<0xFF800000> : vector<8xf32>
    %38 = vector.multi_reduction <maximumf>, %36, %cst_17 [1] : vector<8x8xf32> to vector<8xf32>
    %39 = vector.shape_cast %38 : vector<8xf32> to vector<8x1xf32>
    %40 = arith.maximumf %37, %39 : vector<8x1xf32>
    %41 = arith.subf %37, %40 : vector<8x1xf32>
    %42 = math.exp %41 : vector<8x1xf32>
    %43 = vector.broadcast %40 : vector<8x1xf32> to vector<8x8xf32>
    %44 = arith.subf %36, %43 : vector<8x8xf32>
    %45 = math.exp %44 : vector<8x8xf32>
    %46 = vector.extract_strided_slice %10 {offsets = [0, 1], sizes = [8, 1], strides = [1, 1]} : vector<8x8xf32> to vector<8x1xf32>
    %47 = arith.mulf %42, %46 : vector<8x1xf32>
    %cst_18 = arith.constant dense<0.000000e+00> : vector<8xf32>
    %48 = vector.multi_reduction <add>, %45, %cst_18 [1] : vector<8x8xf32> to vector<8xf32>
    %49 = vector.shape_cast %48 : vector<8xf32> to vector<8x1xf32>
    %50 = arith.addf %47, %49 : vector<8x1xf32>
    %51 = arith.truncf %45 : vector<8x8xf32> to vector<8x8xbf16>
    %cst_19 = arith.constant dense<0.000000e+00> : vector<8x4xf32>
    %52 = tpu.matmul %51, %35, %cst_19 {dimension_numbers = #tpu.dot_dimension_numbers<[1], [0], [0], [1], [0, 0, 1, 1], [], []>} : vector<8x8xbf16>, vector<8x4xbf16>, vector<8x4xf32> -> vector<8x4xf32>
    %53 = vector.shape_cast %42 : vector<8x1xf32> to vector<8x1xf32>
    %54 = vector.broadcast %53 : vector<8x1xf32> to vector<8x4xf32>
    %55 = vector.extract_strided_slice %4 {offsets = [0, 8], sizes = [8, 4], strides = [1, 1]} : vector<8x32xbf16> to vector<8x4xbf16>
    %56 = vector.extract_strided_slice %6 {offsets = [0, 8], sizes = [8, 4], strides = [1, 1]} : vector<8x32xbf16> to vector<8x4xbf16>
    %57 = vector.extract_strided_slice %8 {offsets = [0, 8], sizes = [8, 4], strides = [1, 1]} : vector<8x32xbf16> to vector<8x4xbf16>
    %cst_20 = arith.constant dense<0.000000e+00> : vector<8x8xf32>
    %58 = tpu.matmul %55, %56, %cst_20 {dimension_numbers = #tpu.dot_dimension_numbers<[1], [1], [0], [0], [0, 0, 1, 0], [], []>} : vector<8x4xbf16>, vector<8x4xbf16>, vector<8x8xf32> -> vector<8x8xf32>
    %59 = vector.extract_strided_slice %9 {offsets = [0, 2], sizes = [8, 1], strides = [1, 1]} : vector<8x8xf32> to vector<8x1xf32>
    %cst_21 = arith.constant dense<0xFF800000> : vector<8xf32>
    %60 = vector.multi_reduction <maximumf>, %58, %cst_21 [1] : vector<8x8xf32> to vector<8xf32>
    %61 = vector.shape_cast %60 : vector<8xf32> to vector<8x1xf32>
    %62 = arith.maximumf %59, %61 : vector<8x1xf32>
    %63 = arith.subf %59, %62 : vector<8x1xf32>
    %64 = math.exp %63 : vector<8x1xf32>
    %65 = vector.broadcast %62 : vector<8x1xf32> to vector<8x8xf32>
    %66 = arith.subf %58, %65 : vector<8x8xf32>
    %67 = math.exp %66 : vector<8x8xf32>
    %68 = vector.extract_strided_slice %10 {offsets = [0, 2], sizes = [8, 1], strides = [1, 1]} : vector<8x8xf32> to vector<8x1xf32>
    %69 = arith.mulf %64, %68 : vector<8x1xf32>
    %cst_22 = arith.constant dense<0.000000e+00> : vector<8xf32>
    %70 = vector.multi_reduction <add>, %67, %cst_22 [1] : vector<8x8xf32> to vector<8xf32>
    %71 = vector.shape_cast %70 : vector<8xf32> to vector<8x1xf32>
    %72 = arith.addf %69, %71 : vector<8x1xf32>
    %73 = arith.truncf %67 : vector<8x8xf32> to vector<8x8xbf16>
    %cst_23 = arith.constant dense<0.000000e+00> : vector<8x4xf32>
    %74 = tpu.matmul %73, %57, %cst_23 {dimension_numbers = #tpu.dot_dimension_numbers<[1], [0], [0], [1], [0, 0, 1, 1], [], []>} : vector<8x8xbf16>, vector<8x4xbf16>, vector<8x4xf32> -> vector<8x4xf32>
    %75 = vector.shape_cast %64 : vector<8x1xf32> to vector<8x1xf32>
    %76 = vector.broadcast %75 : vector<8x1xf32> to vector<8x4xf32>
    %77 = vector.extract_strided_slice %4 {offsets = [0, 12], sizes = [8, 4], strides = [1, 1]} : vector<8x32xbf16> to vector<8x4xbf16>
    %78 = vector.extract_strided_slice %6 {offsets = [0, 12], sizes = [8, 4], strides = [1, 1]} : vector<8x32xbf16> to vector<8x4xbf16>
    %79 = vector.extract_strided_slice %8 {offsets = [0, 12], sizes = [8, 4], strides = [1, 1]} : vector<8x32xbf16> to vector<8x4xbf16>
    %cst_24 = arith.constant dense<0.000000e+00> : vector<8x8xf32>
    %80 = tpu.matmul %77, %78, %cst_24 {dimension_numbers = #tpu.dot_dimension_numbers<[1], [1], [0], [0], [0, 0, 1, 0], [], []>} : vector<8x4xbf16>, vector<8x4xbf16>, vector<8x8xf32> -> vector<8x8xf32>
    %81 = vector.extract_strided_slice %9 {offsets = [0, 3], sizes = [8, 1], strides = [1, 1]} : vector<8x8xf32> to vector<8x1xf32>
    %cst_25 = arith.constant dense<0xFF800000> : vector<8xf32>
    %82 = vector.multi_reduction <maximumf>, %80, %cst_25 [1] : vector<8x8xf32> to vector<8xf32>
    %83 = vector.shape_cast %82 : vector<8xf32> to vector<8x1xf32>
    %84 = arith.maximumf %81, %83 : vector<8x1xf32>
    %85 = arith.subf %81, %84 : vector<8x1xf32>
    %86 = math.exp %85 : vector<8x1xf32>
    %87 = vector.broadcast %84 : vector<8x1xf32> to vector<8x8xf32>
    %88 = arith.subf %80, %87 : vector<8x8xf32>
    %89 = math.exp %88 : vector<8x8xf32>
    %90 = vector.extract_strided_slice %10 {offsets = [0, 3], sizes = [8, 1], strides = [1, 1]} : vector<8x8xf32> to vector<8x1xf32>
    %91 = arith.mulf %86, %90 : vector<8x1xf32>
    %cst_26 = arith.constant dense<0.000000e+00> : vector<8xf32>
    %92 = vector.multi_reduction <add>, %89, %cst_26 [1] : vector<8x8xf32> to vector<8xf32>
    %93 = vector.shape_cast %92 : vector<8xf32> to vector<8x1xf32>
    %94 = arith.addf %91, %93 : vector<8x1xf32>
    %95 = arith.truncf %89 : vector<8x8xf32> to vector<8x8xbf16>
    %cst_27 = arith.constant dense<0.000000e+00> : vector<8x4xf32>
    %96 = tpu.matmul %95, %79, %cst_27 {dimension_numbers = #tpu.dot_dimension_numbers<[1], [0], [0], [1], [0, 0, 1, 1], [], []>} : vector<8x8xbf16>, vector<8x4xbf16>, vector<8x4xf32> -> vector<8x4xf32>
    %97 = vector.shape_cast %86 : vector<8x1xf32> to vector<8x1xf32>
    %98 = vector.broadcast %97 : vector<8x1xf32> to vector<8x4xf32>
    %99 = vector.extract_strided_slice %4 {offsets = [0, 16], sizes = [8, 4], strides = [1, 1]} : vector<8x32xbf16> to vector<8x4xbf16>
    %100 = vector.extract_strided_slice %6 {offsets = [0, 16], sizes = [8, 4], strides = [1, 1]} : vector<8x32xbf16> to vector<8x4xbf16>
    %101 = vector.extract_strided_slice %8 {offsets = [0, 16], sizes = [8, 4], strides = [1, 1]} : vector<8x32xbf16> to vector<8x4xbf16>
    %cst_28 = arith.constant dense<0.000000e+00> : vector<8x8xf32>
    %102 = tpu.matmul %99, %100, %cst_28 {dimension_numbers = #tpu.dot_dimension_numbers<[1], [1], [0], [0], [0, 0, 1, 0], [], []>} : vector<8x4xbf16>, vector<8x4xbf16>, vector<8x8xf32> -> vector<8x8xf32>
    %103 = vector.extract_strided_slice %9 {offsets = [0, 4], sizes = [8, 1], strides = [1, 1]} : vector<8x8xf32> to vector<8x1xf32>
    %cst_29 = arith.constant dense<0xFF800000> : vector<8xf32>
    %104 = vector.multi_reduction <maximumf>, %102, %cst_29 [1] : vector<8x8xf32> to vector<8xf32>
    %105 = vector.shape_cast %104 : vector<8xf32> to vector<8x1xf32>
    %106 = arith.maximumf %103, %105 : vector<8x1xf32>
    %107 = arith.subf %103, %106 : vector<8x1xf32>
    %108 = math.exp %107 : vector<8x1xf32>
    %109 = vector.broadcast %106 : vector<8x1xf32> to vector<8x8xf32>
    %110 = arith.subf %102, %109 : vector<8x8xf32>
    %111 = math.exp %110 : vector<8x8xf32>
    %112 = vector.extract_strided_slice %10 {offsets = [0, 4], sizes = [8, 1], strides = [1, 1]} : vector<8x8xf32> to vector<8x1xf32>
    %113 = arith.mulf %108, %112 : vector<8x1xf32>
    %cst_30 = arith.constant dense<0.000000e+00> : vector<8xf32>
    %114 = vector.multi_reduction <add>, %111, %cst_30 [1] : vector<8x8xf32> to vector<8xf32>
    %115 = vector.shape_cast %114 : vector<8xf32> to vector<8x1xf32>
    %116 = arith.addf %113, %115 : vector<8x1xf32>
    %117 = arith.truncf %111 : vector<8x8xf32> to vector<8x8xbf16>
    %cst_31 = arith.constant dense<0.000000e+00> : vector<8x4xf32>
    %118 = tpu.matmul %117, %101, %cst_31 {dimension_numbers = #tpu.dot_dimension_numbers<[1], [0], [0], [1], [0, 0, 1, 1], [], []>} : vector<8x8xbf16>, vector<8x4xbf16>, vector<8x4xf32> -> vector<8x4xf32>
    %119 = vector.shape_cast %108 : vector<8x1xf32> to vector<8x1xf32>
    %120 = vector.broadcast %119 : vector<8x1xf32> to vector<8x4xf32>
    %121 = vector.extract_strided_slice %4 {offsets = [0, 20], sizes = [8, 4], strides = [1, 1]} : vector<8x32xbf16> to vector<8x4xbf16>
    %122 = vector.extract_strided_slice %6 {offsets = [0, 20], sizes = [8, 4], strides = [1, 1]} : vector<8x32xbf16> to vector<8x4xbf16>
    %123 = vector.extract_strided_slice %8 {offsets = [0, 20], sizes = [8, 4], strides = [1, 1]} : vector<8x32xbf16> to vector<8x4xbf16>
    %cst_32 = arith.constant dense<0.000000e+00> : vector<8x8xf32>
    %124 = tpu.matmul %121, %122, %cst_32 {dimension_numbers = #tpu.dot_dimension_numbers<[1], [1], [0], [0], [0, 0, 1, 0], [], []>} : vector<8x4xbf16>, vector<8x4xbf16>, vector<8x8xf32> -> vector<8x8xf32>
    %125 = vector.extract_strided_slice %9 {offsets = [0, 5], sizes = [8, 1], strides = [1, 1]} : vector<8x8xf32> to vector<8x1xf32>
    %cst_33 = arith.constant dense<0xFF800000> : vector<8xf32>
    %126 = vector.multi_reduction <maximumf>, %124, %cst_33 [1] : vector<8x8xf32> to vector<8xf32>
    %127 = vector.shape_cast %126 : vector<8xf32> to vector<8x1xf32>
    %128 = arith.maximumf %125, %127 : vector<8x1xf32>
    %129 = arith.subf %125, %128 : vector<8x1xf32>
    %130 = math.exp %129 : vector<8x1xf32>
    %131 = vector.broadcast %128 : vector<8x1xf32> to vector<8x8xf32>
    %132 = arith.subf %124, %131 : vector<8x8xf32>
    %133 = math.exp %132 : vector<8x8xf32>
    %134 = vector.extract_strided_slice %10 {offsets = [0, 5], sizes = [8, 1], strides = [1, 1]} : vector<8x8xf32> to vector<8x1xf32>
    %135 = arith.mulf %130, %134 : vector<8x1xf32>
    %cst_34 = arith.constant dense<0.000000e+00> : vector<8xf32>
    %136 = vector.multi_reduction <add>, %133, %cst_34 [1] : vector<8x8xf32> to vector<8xf32>
    %137 = vector.shape_cast %136 : vector<8xf32> to vector<8x1xf32>
    %138 = arith.addf %135, %137 : vector<8x1xf32>
    %139 = arith.truncf %133 : vector<8x8xf32> to vector<8x8xbf16>
    %cst_35 = arith.constant dense<0.000000e+00> : vector<8x4xf32>
    %140 = tpu.matmul %139, %123, %cst_35 {dimension_numbers = #tpu.dot_dimension_numbers<[1], [0], [0], [1], [0, 0, 1, 1], [], []>} : vector<8x8xbf16>, vector<8x4xbf16>, vector<8x4xf32> -> vector<8x4xf32>
    %141 = vector.shape_cast %130 : vector<8x1xf32> to vector<8x1xf32>
    %142 = vector.broadcast %141 : vector<8x1xf32> to vector<8x4xf32>
    %143 = vector.extract_strided_slice %4 {offsets = [0, 24], sizes = [8, 4], strides = [1, 1]} : vector<8x32xbf16> to vector<8x4xbf16>
    %144 = vector.extract_strided_slice %6 {offsets = [0, 24], sizes = [8, 4], strides = [1, 1]} : vector<8x32xbf16> to vector<8x4xbf16>
    %145 = vector.extract_strided_slice %8 {offsets = [0, 24], sizes = [8, 4], strides = [1, 1]} : vector<8x32xbf16> to vector<8x4xbf16>
    %cst_36 = arith.constant dense<0.000000e+00> : vector<8x8xf32>
    %146 = tpu.matmul %143, %144, %cst_36 {dimension_numbers = #tpu.dot_dimension_numbers<[1], [1], [0], [0], [0, 0, 1, 0], [], []>} : vector<8x4xbf16>, vector<8x4xbf16>, vector<8x8xf32> -> vector<8x8xf32>
    %147 = vector.extract_strided_slice %9 {offsets = [0, 6], sizes = [8, 1], strides = [1, 1]} : vector<8x8xf32> to vector<8x1xf32>
    %cst_37 = arith.constant dense<0xFF800000> : vector<8xf32>
    %148 = vector.multi_reduction <maximumf>, %146, %cst_37 [1] : vector<8x8xf32> to vector<8xf32>
    %149 = vector.shape_cast %148 : vector<8xf32> to vector<8x1xf32>
    %150 = arith.maximumf %147, %149 : vector<8x1xf32>
    %151 = arith.subf %147, %150 : vector<8x1xf32>
    %152 = math.exp %151 : vector<8x1xf32>
    %153 = vector.broadcast %150 : vector<8x1xf32> to vector<8x8xf32>
    %154 = arith.subf %146, %153 : vector<8x8xf32>
    %155 = math.exp %154 : vector<8x8xf32>
    %156 = vector.extract_strided_slice %10 {offsets = [0, 6], sizes = [8, 1], strides = [1, 1]} : vector<8x8xf32> to vector<8x1xf32>
    %157 = arith.mulf %152, %156 : vector<8x1xf32>
    %cst_38 = arith.constant dense<0.000000e+00> : vector<8xf32>
    %158 = vector.multi_reduction <add>, %155, %cst_38 [1] : vector<8x8xf32> to vector<8xf32>
    %159 = vector.shape_cast %158 : vector<8xf32> to vector<8x1xf32>
    %160 = arith.addf %157, %159 : vector<8x1xf32>
    %161 = arith.truncf %155 : vector<8x8xf32> to vector<8x8xbf16>
    %cst_39 = arith.constant dense<0.000000e+00> : vector<8x4xf32>
    %162 = tpu.matmul %161, %145, %cst_39 {dimension_numbers = #tpu.dot_dimension_numbers<[1], [0], [0], [1], [0, 0, 1, 1], [], []>} : vector<8x8xbf16>, vector<8x4xbf16>, vector<8x4xf32> -> vector<8x4xf32>
    %163 = vector.shape_cast %152 : vector<8x1xf32> to vector<8x1xf32>
    %164 = vector.broadcast %163 : vector<8x1xf32> to vector<8x4xf32>
    %165 = vector.extract_strided_slice %4 {offsets = [0, 28], sizes = [8, 4], strides = [1, 1]} : vector<8x32xbf16> to vector<8x4xbf16>
    %166 = vector.extract_strided_slice %6 {offsets = [0, 28], sizes = [8, 4], strides = [1, 1]} : vector<8x32xbf16> to vector<8x4xbf16>
    %167 = vector.extract_strided_slice %8 {offsets = [0, 28], sizes = [8, 4], strides = [1, 1]} : vector<8x32xbf16> to vector<8x4xbf16>
    %cst_40 = arith.constant dense<0.000000e+00> : vector<8x8xf32>
    %168 = tpu.matmul %165, %166, %cst_40 {dimension_numbers = #tpu.dot_dimension_numbers<[1], [1], [0], [0], [0, 0, 1, 0], [], []>} : vector<8x4xbf16>, vector<8x4xbf16>, vector<8x8xf32> -> vector<8x8xf32>
    %169 = vector.extract_strided_slice %9 {offsets = [0, 7], sizes = [8, 1], strides = [1, 1]} : vector<8x8xf32> to vector<8x1xf32>
    %cst_41 = arith.constant dense<0xFF800000> : vector<8xf32>
    %170 = vector.multi_reduction <maximumf>, %168, %cst_41 [1] : vector<8x8xf32> to vector<8xf32>
    %171 = vector.shape_cast %170 : vector<8xf32> to vector<8x1xf32>
    %172 = arith.maximumf %169, %171 : vector<8x1xf32>
    %173 = arith.subf %169, %172 : vector<8x1xf32>
    %174 = math.exp %173 : vector<8x1xf32>
    %175 = vector.broadcast %172 : vector<8x1xf32> to vector<8x8xf32>
    %176 = arith.subf %168, %175 : vector<8x8xf32>
    %177 = math.exp %176 : vector<8x8xf32>
    %178 = vector.extract_strided_slice %10 {offsets = [0, 7], sizes = [8, 1], strides = [1, 1]} : vector<8x8xf32> to vector<8x1xf32>
    %179 = arith.mulf %174, %178 : vector<8x1xf32>
    %cst_42 = arith.constant dense<0.000000e+00> : vector<8xf32>
    %180 = vector.multi_reduction <add>, %177, %cst_42 [1] : vector<8x8xf32> to vector<8xf32>
    %181 = vector.shape_cast %180 : vector<8xf32> to vector<8x1xf32>
    %182 = arith.addf %179, %181 : vector<8x1xf32>
    %183 = arith.truncf %177 : vector<8x8xf32> to vector<8x8xbf16>
    %cst_43 = arith.constant dense<0.000000e+00> : vector<8x4xf32>
    %184 = tpu.matmul %183, %167, %cst_43 {dimension_numbers = #tpu.dot_dimension_numbers<[1], [0], [0], [1], [0, 0, 1, 1], [], []>} : vector<8x8xbf16>, vector<8x4xbf16>, vector<8x4xf32> -> vector<8x4xf32>
    %185 = vector.shape_cast %174 : vector<8x1xf32> to vector<8x1xf32>
    %186 = vector.broadcast %185 : vector<8x1xf32> to vector<8x4xf32>
    %187 = tpu.concatenate %30, %52, %74, %96, %118, %140, %162, %184 in 1 : vector<8x4xf32>, vector<8x4xf32>, vector<8x4xf32>, vector<8x4xf32>, vector<8x4xf32>, vector<8x4xf32>, vector<8x4xf32>, vector<8x4xf32> -> vector<8x32xf32>
    %188 = tpu.concatenate %32, %54, %76, %98, %120, %142, %164, %186 in 1 : vector<8x4xf32>, vector<8x4xf32>, vector<8x4xf32>, vector<8x4xf32>, vector<8x4xf32>, vector<8x4xf32>, vector<8x4xf32>, vector<8x4xf32> -> vector<8x32xf32>
    %c0_44 = arith.constant 0 : index
    %c0_45 = arith.constant 0 : index
    %189 = vector.load %arg10[%c0_44, %c0_45] : memref<8x32xf32, #tpu.memory_space<vmem>>, vector<8x32xf32>
    %190 = arith.mulf %188, %189 : vector<8x32xf32>
    %191 = arith.addf %190, %187 : vector<8x32xf32>
    %c0_46 = arith.constant 0 : index
    %c0_47 = arith.constant 0 : index
    %192 = vector.load %arg10[%c0_46, %c0_47] : memref<8x32xf32, #tpu.memory_space<vmem>>, vector<8x32xf32>
    tpu.vector_store %arg10[%c0_46, %c0_47], %191 {strides = array<i32>} : memref<8x32xf32, #tpu.memory_space<vmem>>, vector<8x32xf32>,
    %193 = tpu.concatenate %18, %40, %62, %84, %106, %128, %150, %172 in 1 : vector<8x1xf32>, vector<8x1xf32>, vector<8x1xf32>, vector<8x1xf32>, vector<8x1xf32>, vector<8x1xf32>, vector<8x1xf32>, vector<8x1xf32> -> vector<8x8xf32>
    %c0_48 = arith.constant 0 : index
    %c0_49 = arith.constant 0 : index
    %194 = vector.load %arg8[%c0_48, %c0_49] : memref<8x8xf32, #tpu.memory_space<vmem>>, vector<8x8xf32>
    tpu.vector_store %arg8[%c0_48, %c0_49], %193 {strides = array<i32>} : memref<8x8xf32, #tpu.memory_space<vmem>>, vector<8x8xf32>,
    %195 = tpu.concatenate %28, %50, %72, %94, %116, %138, %160, %182 in 1 : vector<8x1xf32>, vector<8x1xf32>, vector<8x1xf32>, vector<8x1xf32>, vector<8x1xf32>, vector<8x1xf32>, vector<8x1xf32>, vector<8x1xf32> -> vector<8x8xf32>
    %c0_50 = arith.constant 0 : index
    %c0_51 = arith.constant 0 : index
    %196 = vector.load %arg9[%c0_50, %c0_51] : memref<8x8xf32, #tpu.memory_space<vmem>>, vector<8x8xf32>
    tpu.vector_store %arg9[%c0_50, %c0_51], %195 {strides = array<i32>} : memref<8x8xf32, #tpu.memory_space<vmem>>, vector<8x8xf32>,
    %c0_i32_52 = arith.constant 0 : i32
    %197 = arith.cmpi eq, %arg2, %c0_i32_52 : i32
    %198 = arith.extui %197 : i1 to i32
    %c0_i32_53 = arith.constant 0 : i32
    %199 = arith.cmpi ne, %198, %c0_i32_53 : i32
    scf.if %199 {
      %c0_54 = arith.constant 0 : index
      %c0_55 = arith.constant 0 : index
      %200 = vector.load %arg9[%c0_54, %c0_55] : memref<8x8xf32, #tpu.memory_space<vmem>>, vector<8x8xf32>
      %201 = tpu.reciprocal %200 : vector<8x8xf32> -> vector<8x8xf32>
      %202 = vector.extract_strided_slice %201 {offsets = [0, 0], sizes = [8, 1], strides = [1, 1]} : vector<8x8xf32> to vector<8x1xf32>
      %203 = vector.shape_cast %202 : vector<8x1xf32> to vector<8x1xf32>
      %204 = vector.broadcast %203 : vector<8x1xf32> to vector<8x4xf32>
      %205 = vector.extract_strided_slice %201 {offsets = [0, 1], sizes = [8, 1], strides = [1, 1]} : vector<8x8xf32> to vector<8x1xf32>
      %206 = vector.shape_cast %205 : vector<8x1xf32> to vector<8x1xf32>
      %207 = vector.broadcast %206 : vector<8x1xf32> to vector<8x4xf32>
      %208 = vector.extract_strided_slice %201 {offsets = [0, 2], sizes = [8, 1], strides = [1, 1]} : vector<8x8xf32> to vector<8x1xf32>
      %209 = vector.shape_cast %208 : vector<8x1xf32> to vector<8x1xf32>
      %210 = vector.broadcast %209 : vector<8x1xf32> to vector<8x4xf32>
      %211 = vector.extract_strided_slice %201 {offsets = [0, 3], sizes = [8, 1], strides = [1, 1]} : vector<8x8xf32> to vector<8x1xf32>
      %212 = vector.shape_cast %211 : vector<8x1xf32> to vector<8x1xf32>
      %213 = vector.broadcast %212 : vector<8x1xf32> to vector<8x4xf32>
      %214 = vector.extract_strided_slice %201 {offsets = [0, 4], sizes = [8, 1], strides = [1, 1]} : vector<8x8xf32> to vector<8x1xf32>
      %215 = vector.shape_cast %214 : vector<8x1xf32> to vector<8x1xf32>
      %216 = vector.broadcast %215 : vector<8x1xf32> to vector<8x4xf32>
      %217 = vector.extract_strided_slice %201 {offsets = [0, 5], sizes = [8, 1], strides = [1, 1]} : vector<8x8xf32> to vector<8x1xf32>
      %218 = vector.shape_cast %217 : vector<8x1xf32> to vector<8x1xf32>
      %219 = vector.broadcast %218 : vector<8x1xf32> to vector<8x4xf32>
      %220 = vector.extract_strided_slice %201 {offsets = [0, 6], sizes = [8, 1], strides = [1, 1]} : vector<8x8xf32> to vector<8x1xf32>
      %221 = vector.shape_cast %220 : vector<8x1xf32> to vector<8x1xf32>
      %222 = vector.broadcast %221 : vector<8x1xf32> to vector<8x4xf32>
      %223 = vector.extract_strided_slice %201 {offsets = [0, 7], sizes = [8, 1], strides = [1, 1]} : vector<8x8xf32> to vector<8x1xf32>
      %224 = vector.shape_cast %223 : vector<8x1xf32> to vector<8x1xf32>
      %225 = vector.broadcast %224 : vector<8x1xf32> to vector<8x4xf32>
      %226 = tpu.concatenate %204, %207, %210, %213, %216, %219, %222, %225 in 1 : vector<8x4xf32>, vector<8x4xf32>, vector<8x4xf32>, vector<8x4xf32>, vector<8x4xf32>, vector<8x4xf32>, vector<8x4xf32>, vector<8x4xf32> -> vector<8x32xf32>
      %c0_56 = arith.constant 0 : index
      %c0_57 = arith.constant 0 : index
      %227 = vector.load %arg10[%c0_56, %c0_57] : memref<8x32xf32, #tpu.memory_space<vmem>>, vector<8x32xf32>
      %228 = arith.mulf %227, %226 : vector<8x32xf32>
      %229 = arith.truncf %228 : vector<8x32xf32> to vector<8x32xbf16>
      %c0_58 = arith.constant 0 : index
      %c0_59 = arith.constant 0 : index
      %230 = vector.load %arg6[%c0_58, %c0_59] : memref<32x32xbf16, #tpu.memory_space<vmem>>, vector<32x32xbf16>
      %cst_60 = arith.constant dense<0.000000e+00> : vector<8x32xf32>
      %231 = tpu.matmul %229, %230, %cst_60 {dimension_numbers = #tpu.dot_dimension_numbers<[1], [0], [0], [1], [0, 0, 1, 1], [], []>} : vector<8x32xbf16>, vector<32x32xbf16>, vector<8x32xf32> -> vector<8x32xf32>
      %c0_61 = arith.constant 0 : index
      %c0_62 = arith.constant 0 : index
      %c0_63 = arith.constant 0 : index
      %232 = vector.load %arg7[%c0_61, %c0_62, %c0_63] : memref<1x8x32xf32, #tpu.memory_space<vmem>>, vector<1x8x32xf32>
      %233 = vector.shape_cast %232 : vector<1x8x32xf32> to vector<8x32xf32>
      %234 = vector.shape_cast %231 : vector<8x32xf32> to vector<1x8x32xf32>
      tpu.vector_store %arg7[%c0_61, %c0_62, %c0_63], %234 {strides = array<i32>} : memref<1x8x32xf32, #tpu.memory_space<vmem>>, vector<1x8x32xf32>,
    } else {
    }
    return
  }
  func.func @transform_0(%arg0: i32, %arg1: i32, %arg2: i32) -> (i32, i32, i32) {
    %c0_i32 = arith.constant 0 : i32
    %c0_i32_0 = arith.constant 0 : i32
    return %arg0, %arg1, %c0_i32 : i32, i32, i32
  }
  func.func @transform_1(%arg0: i32, %arg1: i32, %arg2: i32) -> (i32, i32, i32) {
    %c0_i32 = arith.constant 0 : i32
    %c0_i32_0 = arith.constant 0 : i32
    return %arg0, %arg2, %c0_i32 : i32, i32, i32
  }
  func.func @transform_2(%arg0: i32, %arg1: i32, %arg2: i32) -> (i32, i32, i32) {
    %c0_i32 = arith.constant 0 : i32
    %c0_i32_0 = arith.constant 0 : i32
    return %arg0, %arg2, %c0_i32 : i32, i32, i32
  }
  func.func @transform_3(%arg0: i32, %arg1: i32, %arg2: i32) -> (i32, i32) {
    %c0_i32 = arith.constant 0 : i32
    %c0_i32_0 = arith.constant 0 : i32
    %c0_i32_1 = arith.constant 0 : i32
    return %c0_i32, %c0_i32_0 : i32, i32
  }
  func.func @transform_4(%arg0: i32, %arg1: i32, %arg2: i32) -> (i32, i32, i32) {
    %c0_i32 = arith.constant 0 : i32
    %c0_i32_0 = arith.constant 0 : i32
    return %arg0, %arg1, %c0_i32 : i32, i32, i32
  }
}

</mosaic_0001>

<llo_original>
// kernel: memory_efficient_attention.2
$region0: #{memory_efficient_attention.2}
  #allocation0 [shape = 'u32[]', space=smem, size = 0x4, offset = 0x4, fixed_abs, tag = 'smem constant byte address 0x4 - core index']
  #allocation1 [shape = 'u32[72,128]{1,0:T(1,128)}', space=vmem, size = 0x9000, scoped, tag = 'internal scratch']
  %s0 = inlined_call_operand.vmem [shape: bf16[2,8,32], index: 0, kind: input, shape index: {}]
  %s1 = inlined_call_operand.vmem [shape: bf16[32,96], index: 1, kind: input, shape index: {}]
  %s2 = inlined_call_operand.vmem [shape: bf16[2,8,32], index: 2, kind: output, shape index: {0}]
  %s3 = inlined_call_operand.vmem [shape: bf16[2,8,32], index: 3, kind: output, shape index: {1}]
  %s4 = inlined_call_operand.vmem [shape: bf16[2,8,32], index: 4, kind: output, shape index: {2}]
  %5 = xla_tuple %s2, %s3, %s4
  %s6 = sld [smem:[#allocation0]]
  $region57: #{memory_efficient_attention.2} parent=0
    _
  %s8 = ssub.s32 1, %s6
  %s9 = scalar_select 0, %s8, %s6
  loop: start=0, step=1, limit=4
  $region2: #{memory_efficient_attention.2} parent=0 // loop_pre_header
    _
  $region3: #{memory_efficient_attention.2} parent=0 // loop_header
    %s11 = sphi 0, %s15
    %p12 = scmp.ge.s32.totalorder %s11, 4
    %s18 = sphi 0, %s30
    %s19 = sphi 0, %s26
    %s20 = sphi 0, %s18
    %s21 = sphi 0, %s19
    %s22 = sphi 0, %s20
    %s23 = sphi 0, %s21
    %s35 = sphi 0, %s37
    %s38 = sphi 0, %s35
    %s39 = sphi 0, %s38
    %s55 = sphi 0, %s39
    %s59 = sphi 0, %s59
    %s61 = sphi 0, %s59
    %s62 = sphi 0, %s61
    %s76 = sphi 0, %s62
    %s84 = sphi 0, %s86
    %s87 = sphi 0, %s84
    %s88 = sphi 0, %s87
    %s104 = sphi 0, %s88
    %s112 = sphi 0, %s114
    %s115 = sphi 0, %s112
    %s116 = sphi 0, %s115
    %s132 = sphi 0, %s116
    %s140 = sphi 0, %s142
    %s143 = sphi 0, %s140
    %s144 = sphi 0, %s143
    %s160 = sphi 0, %s144
  $region4: #{memory_efficient_attention.2} parent=0 // loop_header_branch
    %14 = sbr.rel (%p12) target = $region8
  $region5: #{memory_efficient_attention.2} parent=0 // loop_body
    %s16 = ssub.s32 %s11, 1
    %s17 = ssub.s32 %s11, 2
    %s24 = sadd.s32 1, %s19
    %p25 = scmp.ge.s32.totalorder %s24, 1
    %s26 = scalar_select %p25, 0, %s24
    %s27 = sadd.s32 1, %s18
    %s28 = scalar_select %p25, %s27, %s18
    %p29 = scmp.ge.s32.totalorder %s28, 2
    %s30 = scalar_select %p29, 0, %s28
    %s31 = ssub.s32 %s18, %s30
    %s32 = ssub.s32 %s19, %s26
    %s33 = sor.u32 %s31, %s32
    %p34 = scmp.eq.s32.totalorder %s33, 0
    %s36 = sadd.s32 %s35, 1
    %s37 = scalar_select %p34, %s35, %s36
    %p40 = pneg %p34
    %p41 = scmp.eq.s32.totalorder %s11, 1
    %p42 = por %p40, %p41
    %p43 = scmp.ne.s32.totalorder %s35, %s38
    %p44 = scmp.eq.s32.totalorder %s11, 0
    %p45 = por %p43, %p44
    %p46 = scmp.ne.s32.totalorder %s35, %s38
    %p47 = scmp.eq.s32.totalorder %s16, 1
    %p48 = por %p46, %p47
    %p49 = scmp.ne.s32.totalorder %s38, %s39
    %p50 = scmp.eq.s32.totalorder %s16, 0
    %p51 = por %p49, %p50
    %p52 = scmp.ne.s32.totalorder %s38, %s39
    %p53 = scmp.eq.s32.totalorder %s17, 1
    %p54 = por %p52, %p53
    %p56 = scmp.ne.s32.totalorder %s39, %s55
    %p57 = scmp.eq.s32.totalorder %s17, 0
    %p58 = por %p56, %p57
    %s60 = sadd.s32 %s59, 1
    %p63 = scmp.eq.s32.totalorder %s11, 1
    %p64 = scmp.ne.s32.totalorder %s59, %s61
    %p65 = scmp.eq.s32.totalorder %s11, 0
    %p66 = por %p64, %p65
    %p67 = scmp.ne.s32.totalorder %s59, %s61
    %p68 = scmp.eq.s32.totalorder %s16, 1
    %p69 = por %p67, %p68
    %p70 = scmp.ne.s32.totalorder %s61, %s62
    %p71 = scmp.eq.s32.totalorder %s16, 0
    %p72 = por %p70, %p71
    %p73 = scmp.ne.s32.totalorder %s61, %s62
    %p74 = scmp.eq.s32.totalorder %s17, 1
    %p75 = por %p73, %p74
    %p77 = scmp.ne.s32.totalorder %s62, %s76
    %p78 = scmp.eq.s32.totalorder %s17, 0
    %p79 = por %p77, %p78
    %s80 = ssub.s32 %s18, %s30
    %s81 = ssub.s32 %s19, %s26
    %s82 = sor.u32 %s80, %s81
    %p83 = scmp.eq.s32.totalorder %s82, 0
    %s85 = sadd.s32 %s84, 1
    %s86 = scalar_select %p83, %s84, %s85
    %p89 = pneg %p83
    %p90 = scmp.eq.s32.totalorder %s11, 1
    %p91 = por %p89, %p90
    %p92 = scmp.ne.s32.totalorder %s84, %s87
    %p93 = scmp.eq.s32.totalorder %s11, 0
    %p94 = por %p92, %p93
    %p95 = scmp.ne.s32.totalorder %s84, %s87
    %p96 = scmp.eq.s32.totalorder %s16, 1
    %p97 = por %p95, %p96
    %p98 = scmp.ne.s32.totalorder %s87, %s88
    %p99 = scmp.eq.s32.totalorder %s16, 0
    %p100 = por %p98, %p99
    %p101 = scmp.ne.s32.totalorder %s87, %s88
    %p102 = scmp.eq.s32.totalorder %s17, 1
    %p103 = por %p101, %p102
    %p105 = scmp.ne.s32.totalorder %s88, %s104
    %p106 = scmp.eq.s32.totalorder %s17, 0
    %p107 = por %p105, %p106
    %s108 = ssub.s32 %s18, %s30
    %s109 = ssub.s32 %s19, %s26
    %s110 = sor.u32 %s108, %s109
    %p111 = scmp.eq.s32.totalorder %s110, 0
    %s113 = sadd.s32 %s112, 1
    %s114 = scalar_select %p111, %s112, %s113
    %p117 = pneg %p111
    %p118 = scmp.eq.s32.totalorder %s11, 1
    %p119 = por %p117, %p118
    %p120 = scmp.ne.s32.totalorder %s112, %s115
    %p121 = scmp.eq.s32.totalorder %s11, 0
    %p122 = por %p120, %p121
    %p123 = scmp.ne.s32.totalorder %s112, %s115
    %p124 = scmp.eq.s32.totalorder %s16, 1
    %p125 = por %p123, %p124
    %p126 = scmp.ne.s32.totalorder %s115, %s116
    %p127 = scmp.eq.s32.totalorder %s16, 0
    %p128 = por %p126, %p127
    %p129 = scmp.ne.s32.totalorder %s115, %s116
    %p130 = scmp.eq.s32.totalorder %s17, 1
    %p131 = por %p129, %p130
    %p133 = scmp.ne.s32.totalorder %s116, %s132
    %p134 = scmp.eq.s32.totalorder %s17, 0
    %p135 = por %p133, %p134
    %s136 = ssub.s32 %s18, %s30
    %s137 = ssub.s32 %s19, %s26
    %s138 = sor.u32 %s136, %s137
    %p139 = scmp.eq.s32.totalorder %s138, 0
    %s141 = sadd.s32 %s140, 1
    %s142 = scalar_select %p139, %s140, %s141
    %p145 = pneg %p139
    %p146 = scmp.eq.s32.totalorder %s11, 1
    %p147 = por %p145, %p146
    %p148 = scmp.ne.s32.totalorder %s140, %s143
    %p149 = scmp.eq.s32.totalorder %s11, 0
    %p150 = por %p148, %p149
    %p151 = scmp.ne.s32.totalorder %s140, %s143
    %p152 = scmp.eq.s32.totalorder %s16, 1
    %p153 = por %p151, %p152
    %p154 = scmp.ne.s32.totalorder %s143, %s144
    %p155 = scmp.eq.s32.totalorder %s16, 0
    %p156 = por %p154, %p155
    %p157 = scmp.ne.s32.totalorder %s143, %s144
    %p158 = scmp.eq.s32.totalorder %s17, 1
    %p159 = por %p157, %p158
    %p161 = scmp.ne.s32.totalorder %s144, %s160
    %p162 = scmp.eq.s32.totalorder %s17, 0
    %p163 = por %p161, %p162
    %p164 = scmp.le.s32.totalorder 1, %s11
    %p165 = scmp.lt.s32.totalorder %s11, 3
    %p166 = pnand %p164, %p165
    %p167 = pneg %p166
    // Predicated region
    $region9: #{memory_efficient_attention.2} parent=5 // pred_check
      _
    $region10: #{memory_efficient_attention.2} parent=5 // pred_check_branch
      %169 = sbr.rel (%p166) target = $region12
    $region11: #{memory_efficient_attention.2} parent=5 // pred_region
      %s170 = ssub.s32 %s11, 1
      // Predicated region
      $region13: #{memory_efficient_attention.2} parent=11 // pred_check
        %p171 = pneg %p72
      $region14: #{memory_efficient_attention.2} parent=11 // pred_check_branch
        %173 = sbr.rel (%p171) target = $region16
      $region15: #{memory_efficient_attention.2} parent=11 // pred_region
        _
      $region16: #{memory_efficient_attention.2} parent=11 // pred_fallthru
        _
    $region12: #{memory_efficient_attention.2} parent=5 // pred_fallthru
      _
    %p174 = scmp.lt.s32.totalorder %s11, 2
    // Predicated region
    $region17: #{memory_efficient_attention.2} parent=5 // pred_check
      %p175 = pneg %p174
    $region18: #{memory_efficient_attention.2} parent=5 // pred_check_branch
      %177 = sbr.rel (%p175) target = $region20
    $region19: #{memory_efficient_attention.2} parent=5 // pred_region
      // Predicated region
      $region21: #{memory_efficient_attention.2} parent=19 // pred_check
        %p178 = pneg %p45
      $region22: #{memory_efficient_attention.2} parent=19 // pred_check_branch
        %180 = sbr.rel (%p178) target = $region24
      $region23: #{memory_efficient_attention.2} parent=19 // pred_region
        %p181 = scmp.lt.s32.totalorder %s18, 1
        %s182 = scalar_select %p181, %s18, 1
        %p183 = scmp.lt.s32.totalorder %s19, 0
        %s184 = scalar_select %p183, %s19, 0
        %s185 = sadd.s32 %s184, %s182
        %s186 = smul.addr %s185, 4
        %s187 = scalar_lea.vmem %s0, %s186
      $region24: #{memory_efficient_attention.2} parent=19 // pred_fallthru
        _
    $region20: #{memory_efficient_attention.2} parent=5 // pred_fallthru
      _
    %p188 = scmp.le.s32.totalorder 1, %s11
    %p189 = scmp.lt.s32.totalorder %s11, 3
    %p190 = pnand %p188, %p189
    %p191 = pneg %p190
    // Predicated region
    $region25: #{memory_efficient_attention.2} parent=5 // pred_check
      _
    $region26: #{memory_efficient_attention.2} parent=5 // pred_check_branch
      %193 = sbr.rel (%p190) target = $region28
    $region27: #{memory_efficient_attention.2} parent=5 // pred_region
      %s194 = ssub.s32 %s11, 1
      %p195 = scmp.lt.s32.totalorder %s20, 1
      %s196 = scalar_select %p195, %s20, 1
      %p197 = scmp.lt.s32.totalorder %s21, 0
      %s198 = scalar_select %p197, %s21, 0
      %s199 = sadd.s32 %s198, %s196
      %s200 = smul.addr %s199, 4
      %s201 = scalar_lea.vmem %s0, %s200
      %p202 = pneg %p51
      %p203 = pneg %p48
      %p204 = pneg %p72
      %p205 = pneg %p69
      %p206 = pneg %p100
      %p207 = pneg %p97
      %p208 = scmp.lt.s32.totalorder %s20, 1
      %s209 = scalar_select %p208, %s20, 1
      %p210 = scmp.lt.s32.totalorder %s21, 0
      %s211 = scalar_select %p210, %s21, 0
      %s212 = sadd.s32 %s211, %s209
      %s213 = smul.addr %s212, 4
      %s214 = scalar_lea.vmem %s2, %s213
      %p215 = pneg %p128
      %p216 = pneg %p125
      %p217 = scmp.lt.s32.totalorder %s20, 1
      %s218 = scalar_select %p217, %s20, 1
      %p219 = scmp.lt.s32.totalorder %s21, 0
      %s220 = scalar_select %p219, %s21, 0
      %s221 = sadd.s32 %s220, %s218
      %s222 = smul.addr %s221, 4
      %s223 = scalar_lea.vmem %s3, %s222
      %p224 = pneg %p156
      %p225 = pneg %p153
      %p226 = scmp.lt.s32.totalorder %s20, 1
      %s227 = scalar_select %p226, %s20, 1
      %p228 = scmp.lt.s32.totalorder %s21, 0
      %s229 = scalar_select %p228, %s21, 0
      %s230 = sadd.s32 %s229, %s227
      %s231 = smul.addr %s230, 4
      %s232 = scalar_lea.vmem %s4, %s231
      %p233 = scmp.lt.s32.totalorder %s20, 1
      %s234 = scalar_select %p233, %s20, 1
      %p235 = scmp.lt.s32.totalorder %s21, 0
      %s236 = scalar_select %p235, %s21, 0
      %s237 = sadd.s32 %s236, %s234
      %s238 = smul.addr %s237, 4
      %s239 = scalar_lea.vmem %s0, %s238
      %p240 = scmp.lt.s32.totalorder %s20, 1
      %s241 = scalar_select %p240, %s20, 1
      %p242 = scmp.lt.s32.totalorder %s21, 0
      %s243 = scalar_select %p242, %s21, 0
      %s244 = sadd.s32 %s243, %s241
      %s245 = smul.addr %s244, 4
      %s246 = scalar_lea.vmem %s2, %s245
      %p247 = scmp.lt.s32.totalorder %s20, 1
      %s248 = scalar_select %p247, %s20, 1
      %p249 = scmp.lt.s32.totalorder %s21, 0
      %s250 = scalar_select %p249, %s21, 0
      %s251 = sadd.s32 %s250, %s248
      %s252 = smul.addr %s251, 4
      %s253 = scalar_lea.vmem %s3, %s252
      %p254 = scmp.lt.s32.totalorder %s20, 1
      %s255 = scalar_select %p254, %s20, 1
      %p256 = scmp.lt.s32.totalorder %s21, 0
      %s257 = scalar_select %p256, %s21, 0
      %s258 = sadd.s32 %s257, %s255
      %s259 = smul.addr %s258, 4
      %s260 = scalar_lea.vmem %s4, %s259
      %v262 = vld [vmem:[%s239] sm:$0xf]
      %v263 = vld [vmem:[%s1] sm:$0xf]
      %v264 = vld [vmem:[%s1 + $0x4] sm:$0xf]
      %v265 = vld [vmem:[%s1 + $0x8] sm:$0xf]
      %v266 = vld [vmem:[%s1 + $0xc] sm:$0xf]
      %v271 = vunpack.c.l.b16 %v263
      %v272 = vunpack.c.l.b16 %v264
      %v273 = vunpack.c.l.b16 %v265
      %v274 = vunpack.c.l.b16 %v266
      %v275 = vpack.c.b16 %v272, %v271
      %v276 = vpack.c.b16 %v274, %v273
      %vm279 = vcmask 261120
      %v281 = vsel %vm279, %v262, 0
      %283 = vmatpush.bf16.msra.mxu0 0
      %284 = vmatpush.bf16.msra.mxu0 0
      %285 = vmatpush.bf16.msra.mxu0 0
      %286 = vmatpush.bf16.msra.mxu0 0
      %287 = vmatpush.bf16.msra.mxu0 0
      %288 = vmatpush.bf16.msra.mxu0 0
      %289 = vmatpush.bf16.msra.mxu0 %v276
      %290 = vmatpush.bf16.msra.mxu0 %v275
      %291 = vmatmul.bf16.gmra.mxu0 %v281
      %v292 = vpop.f32.mrf.mxu0
      %v293 = vadd.f32 0.0, %v292
      %v294 = vpop.f32.mrf.mxu0
      %295 = vdwg.mxu0
      %v296 = vpack.c.bf16 %v293, %v293
      %vm297 = vcmask 257024
      %298 = vst.msk [vmem:[%s246] sm:$0xf] %vm297, %v296
      %300 = vrot.lane.b32.xlu0 %v296, 96
      %v301 = vpop.permute.xlu0 %300
      %303 = vst.msk [vmem:[%s253] sm:$0xf] %vm297, %v301
      %304 = vrot.lane.b32.xlu0 %v296, 64
      %v305 = vpop.permute.xlu0 %304
      %307 = vst.msk [vmem:[%s260] sm:$0xf] %vm297, %v305
      %p308 = scmp.lt.s32.totalorder %s20, 1
      %s309 = scalar_select %p308, %s20, 1
      %p310 = scmp.lt.s32.totalorder %s21, 0
      %s311 = scalar_select %p310, %s21, 0
      %s312 = sadd.s32 %s311, %s309
      %s313 = smul.addr %s312, 4
      %s314 = scalar_lea.vmem %s2, %s313
      %p315 = scmp.lt.s32.totalorder %s20, 1
      %s316 = scalar_select %p315, %s20, 1
      %p317 = scmp.lt.s32.totalorder %s21, 0
      %s318 = scalar_select %p317, %s21, 0
      %s319 = sadd.s32 %s318, %s316
      %s320 = smul.addr %s319, 4
      %s321 = scalar_lea.vmem %s3, %s320
      %p322 = scmp.lt.s32.totalorder %s20, 1
      %s323 = scalar_select %p322, %s20, 1
      %p324 = scmp.lt.s32.totalorder %s21, 0
      %s325 = scalar_select %p324, %s21, 0
      %s326 = sadd.s32 %s325, %s323
      %s327 = smul.addr %s326, 4
      %s328 = scalar_lea.vmem %s4, %s327
      // Predicated region
      $region29: #{memory_efficient_attention.2} parent=27 // pred_check
        %p329 = pneg %p97
      $region30: #{memory_efficient_attention.2} parent=27 // pred_check_branch
        %331 = sbr.rel (%p329) target = $region32
      $region31: #{memory_efficient_attention.2} parent=27 // pred_region
        _
      $region32: #{memory_efficient_attention.2} parent=27 // pred_fallthru
        _
      // Predicated region
      $region33: #{memory_efficient_attention.2} parent=27 // pred_check
        %p332 = pneg %p125
      $region34: #{memory_efficient_attention.2} parent=27 // pred_check_branch
        %334 = sbr.rel (%p332) target = $region36
      $region35: #{memory_efficient_attention.2} parent=27 // pred_region
        _
      $region36: #{memory_efficient_attention.2} parent=27 // pred_fallthru
        _
      // Predicated region
      $region37: #{memory_efficient_attention.2} parent=27 // pred_check
        %p335 = pneg %p153
      $region38: #{memory_efficient_attention.2} parent=27 // pred_check_branch
        %337 = sbr.rel (%p335) target = $region40
      $region39: #{memory_efficient_attention.2} parent=27 // pred_region
        _
      $region40: #{memory_efficient_attention.2} parent=27 // pred_fallthru
        _
    $region28: #{memory_efficient_attention.2} parent=5 // pred_fallthru
      _
    %p338 = scmp.le.s32.totalorder 2, %s11
    // Predicated region
    $region41: #{memory_efficient_attention.2} parent=5 // pred_check
      %p339 = pneg %p338
    $region42: #{memory_efficient_attention.2} parent=5 // pred_check_branch
      %341 = sbr.rel (%p339) target = $region44
    $region43: #{memory_efficient_attention.2} parent=5 // pred_region
      %s342 = ssub.s32 %s11, 2
      // Predicated region
      $region45: #{memory_efficient_attention.2} parent=43 // pred_check
        %p343 = pneg %p103
      $region46: #{memory_efficient_attention.2} parent=43 // pred_check_branch
        %345 = sbr.rel (%p343) target = $region48
      $region47: #{memory_efficient_attention.2} parent=43 // pred_region
        %p346 = scmp.lt.s32.totalorder %s22, 1
        %s347 = scalar_select %p346, %s22, 1
        %p348 = scmp.lt.s32.totalorder %s23, 0
        %s349 = scalar_select %p348, %s23, 0
        %s350 = sadd.s32 %s349, %s347
        %s351 = smul.addr %s350, 4
        %s352 = scalar_lea.vmem %s2, %s351
      $region48: #{memory_efficient_attention.2} parent=43 // pred_fallthru
        _
      // Predicated region
      $region49: #{memory_efficient_attention.2} parent=43 // pred_check
        %p353 = pneg %p131
      $region50: #{memory_efficient_attention.2} parent=43 // pred_check_branch
        %355 = sbr.rel (%p353) target = $region52
      $region51: #{memory_efficient_attention.2} parent=43 // pred_region
        %p356 = scmp.lt.s32.totalorder %s22, 1
        %s357 = scalar_select %p356, %s22, 1
        %p358 = scmp.lt.s32.totalorder %s23, 0
        %s359 = scalar_select %p358, %s23, 0
        %s360 = sadd.s32 %s359, %s357
        %s361 = smul.addr %s360, 4
        %s362 = scalar_lea.vmem %s3, %s361
      $region52: #{memory_efficient_attention.2} parent=43 // pred_fallthru
        _
      // Predicated region
      $region53: #{memory_efficient_attention.2} parent=43 // pred_check
        %p363 = pneg %p159
      $region54: #{memory_efficient_attention.2} parent=43 // pred_check_branch
        %365 = sbr.rel (%p363) target = $region56
      $region55: #{memory_efficient_attention.2} parent=43 // pred_region
        %p366 = scmp.lt.s32.totalorder %s22, 1
        %s367 = scalar_select %p366, %s22, 1
        %p368 = scmp.lt.s32.totalorder %s23, 0
        %s369 = scalar_select %p368, %s23, 0
        %s370 = sadd.s32 %s369, %s367
        %s371 = smul.addr %s370, 4
        %s372 = scalar_lea.vmem %s4, %s371
      $region56: #{memory_efficient_attention.2} parent=43 // pred_fallthru
        _
    $region44: #{memory_efficient_attention.2} parent=5 // pred_fallthru
      _
  $region6: #{memory_efficient_attention.2} parent=0 // loop_footer
    %s15 = sadd.s32 1, %s11
  $region7: #{memory_efficient_attention.2} parent=0 // loop_footer_branch
    %10 = sbr.rel target = $region3
  $region8: #{memory_efficient_attention.2} parent=0 // loop_exit
    _

// kernel: memory_efficient_attention.3
$region0: #{memory_efficient_attention.3}
  #allocation0 [shape = 'u32[]', space=smem, size = 0x4, offset = 0x4, fixed_abs, tag = 'smem constant byte address 0x4 - core index']
  #allocation1 [shape = 'u32[72,128]{1,0:T(1,128)}', space=vmem, size = 0x9000, scoped, tag = 'internal scratch']
  #allocation2 [shape = 'f32[8,8]{1,0:T(8,128)}', space=vmem, size = 0x1000, scoped, tag = 'scratch operand']
  #allocation3 [shape = 'f32[8,8]{1,0:T(8,128)}', space=vmem, size = 0x1000, scoped, tag = 'scratch operand']
  #allocation4 [shape = 'f32[8,32]{1,0:T(8,128)}', space=vmem, size = 0x1000, scoped, tag = 'scratch operand']
  %s0 = inlined_call_operand.vmem [shape: bf16[2,8,32], index: 0, kind: input, shape index: {}]
  %s1 = inlined_call_operand.vmem [shape: bf16[2,8,32], index: 1, kind: input, shape index: {}]
  %s2 = inlined_call_operand.vmem [shape: bf16[2,8,32], index: 2, kind: input, shape index: {}]
  %s3 = inlined_call_operand.vmem [shape: bf16[32,32], index: 3, kind: input, shape index: {}]
  %s4 = inlined_call_operand.hbm [shape: f32[2,8,32], index: 4, kind: output, shape index: {}]
  %s5 = sld [smem:[#allocation0]]
  $region57: #{memory_efficient_attention.3} parent=0
    _
  %s7 = ssub.s32 1, %s5
  %s8 = scalar_select 0, %s7, %s5
  $region1: #{memory_efficient_attention.3} parent=0
    #allocation5 [shape = 'u8[8192]{0}', space=vmem, size = 0x2000, scoped, tag = 'output window, operand 0']
    #allocation6 [shape = 's32[2]{0}', space=sflag, size = 0x8, scoped, tag = 'scoped memory for memory_efficient_attention.3']
    %9 = vsyncpa [#allocation6], 0
    %s10 = scalar_lea.sflag [#allocation6], 1
    %11 = vsyncpa %s10, 0
    loop: start=0, step=1, limit=4
    $region2: #{memory_efficient_attention.3} parent=1 // loop_pre_header
      _
    $region3: #{memory_efficient_attention.3} parent=1 // loop_header
      %s13 = sphi 0, %s17
      %p14 = scmp.ge.s32.totalorder %s13, 4
      %s20 = sphi 0, %s39
      %s21 = sphi 0, %s35
      %s22 = sphi 0, %s31
      %s23 = sphi 0, %s20
      %s24 = sphi 0, %s21
      %s25 = sphi 0, %s22
      %s26 = sphi 0, %s23
      %s27 = sphi 0, %s24
      %s28 = sphi 0, %s25
      %s44 = sphi 0, %s46
      %s47 = sphi 0, %s44
      %s48 = sphi 0, %s47
      %s64 = sphi 0, %s48
      %s72 = sphi 0, %s74
      %s75 = sphi 0, %s72
      %s76 = sphi 0, %s75
      %s92 = sphi 0, %s76
      %s100 = sphi 0, %s102
      %s103 = sphi 0, %s100
      %s104 = sphi 0, %s103
      %s120 = sphi 0, %s104
      %s124 = sphi 0, %s124
      %s126 = sphi 0, %s124
      %s127 = sphi 0, %s126
      %s141 = sphi 0, %s127
      %s149 = sphi 0, %s151
      %s152 = sphi 0, %s149
      %s153 = sphi 0, %s152
      %s169 = sphi 0, %s153
    $region4: #{memory_efficient_attention.3} parent=1 // loop_header_branch
      %16 = sbr.rel (%p14) target = $region8
    $region5: #{memory_efficient_attention.3} parent=1 // loop_body
      %s18 = ssub.s32 %s13, 1
      %s19 = ssub.s32 %s13, 2
      %s29 = sadd.s32 1, %s22
      %p30 = scmp.ge.s32.totalorder %s29, 1
      %s31 = scalar_select %p30, 0, %s29
      %s32 = sadd.s32 1, %s21
      %s33 = scalar_select %p30, %s32, %s21
      %p34 = scmp.ge.s32.totalorder %s33, 1
      %s35 = scalar_select %p34, 0, %s33
      %s36 = sadd.s32 1, %s20
      %s37 = scalar_select %p34, %s36, %s20
      %p38 = scmp.ge.s32.totalorder %s37, 2
      %s39 = scalar_select %p38, 0, %s37
      %s40 = ssub.s32 %s20, %s39
      %s41 = ssub.s32 %s21, %s35
      %s42 = sor.u32 %s40, %s41
      %p43 = scmp.eq.s32.totalorder %s42, 0
      %s45 = sadd.s32 %s44, 1
      %s46 = scalar_select %p43, %s44, %s45
      %p49 = pneg %p43
      %p50 = scmp.eq.s32.totalorder %s13, 1
      %p51 = por %p49, %p50
      %p52 = scmp.ne.s32.totalorder %s44, %s47
      %p53 = scmp.eq.s32.totalorder %s13, 0
      %p54 = por %p52, %p53
      %p55 = scmp.ne.s32.totalorder %s44, %s47
      %p56 = scmp.eq.s32.totalorder %s18, 1
      %p57 = por %p55, %p56
      %p58 = scmp.ne.s32.totalorder %s47, %s48
      %p59 = scmp.eq.s32.totalorder %s18, 0
      %p60 = por %p58, %p59
      %p61 = scmp.ne.s32.totalorder %s47, %s48
      %p62 = scmp.eq.s32.totalorder %s19, 1
      %p63 = por %p61, %p62
      %p65 = scmp.ne.s32.totalorder %s48, %s64
      %p66 = scmp.eq.s32.totalorder %s19, 0
      %p67 = por %p65, %p66
      %s68 = ssub.s32 %s20, %s39
      %s69 = ssub.s32 %s22, %s31
      %s70 = sor.u32 %s68, %s69
      %p71 = scmp.eq.s32.totalorder %s70, 0
      %s73 = sadd.s32 %s72, 1
      %s74 = scalar_select %p71, %s72, %s73
      %p77 = pneg %p71
      %p78 = scmp.eq.s32.totalorder %s13, 1
      %p79 = por %p77, %p78
      %p80 = scmp.ne.s32.totalorder %s72, %s75
      %p81 = scmp.eq.s32.totalorder %s13, 0
      %p82 = por %p80, %p81
      %p83 = scmp.ne.s32.totalorder %s72, %s75
      %p84 = scmp.eq.s32.totalorder %s18, 1
      %p85 = por %p83, %p84
      %p86 = scmp.ne.s32.totalorder %s75, %s76
      %p87 = scmp.eq.s32.totalorder %s18, 0
      %p88 = por %p86, %p87
      %p89 = scmp.ne.s32.totalorder %s75, %s76
      %p90 = scmp.eq.s32.totalorder %s19, 1
      %p91 = por %p89, %p90
      %p93 = scmp.ne.s32.totalorder %s76, %s92
      %p94 = scmp.eq.s32.totalorder %s19, 0
      %p95 = por %p93, %p94
      %s96 = ssub.s32 %s20, %s39
      %s97 = ssub.s32 %s22, %s31
      %s98 = sor.u32 %s96, %s97
      %p99 = scmp.eq.s32.totalorder %s98, 0
      %s101 = sadd.s32 %s100, 1
      %s102 = scalar_select %p99, %s100, %s101
      %p105 = pneg %p99
      %p106 = scmp.eq.s32.totalorder %s13, 1
      %p107 = por %p105, %p106
      %p108 = scmp.ne.s32.totalorder %s100, %s103
      %p109 = scmp.eq.s32.totalorder %s13, 0
      %p110 = por %p108, %p109
      %p111 = scmp.ne.s32.totalorder %s100, %s103
      %p112 = scmp.eq.s32.totalorder %s18, 1
      %p113 = por %p111, %p112
      %p114 = scmp.ne.s32.totalorder %s103, %s104
      %p115 = scmp.eq.s32.totalorder %s18, 0
      %p116 = por %p114, %p115
      %p117 = scmp.ne.s32.totalorder %s103, %s104
      %p118 = scmp.eq.s32.totalorder %s19, 1
      %p119 = por %p117, %p118
      %p121 = scmp.ne.s32.totalorder %s104, %s120
      %p122 = scmp.eq.s32.totalorder %s19, 0
      %p123 = por %p121, %p122
      %s125 = sadd.s32 %s124, 1
      %p128 = scmp.eq.s32.totalorder %s13, 1
      %p129 = scmp.ne.s32.totalorder %s124, %s126
      %p130 = scmp.eq.s32.totalorder %s13, 0
      %p131 = por %p129, %p130
      %p132 = scmp.ne.s32.totalorder %s124, %s126
      %p133 = scmp.eq.s32.totalorder %s18, 1
      %p134 = por %p132, %p133
      %p135 = scmp.ne.s32.totalorder %s126, %s127
      %p136 = scmp.eq.s32.totalorder %s18, 0
      %p137 = por %p135, %p136
      %p138 = scmp.ne.s32.totalorder %s126, %s127
      %p139 = scmp.eq.s32.totalorder %s19, 1
      %p140 = por %p138, %p139
      %p142 = scmp.ne.s32.totalorder %s127, %s141
      %p143 = scmp.eq.s32.totalorder %s19, 0
      %p144 = por %p142, %p143
      %s145 = ssub.s32 %s20, %s39
      %s146 = ssub.s32 %s21, %s35
      %s147 = sor.u32 %s145, %s146
      %p148 = scmp.eq.s32.totalorder %s147, 0
      %s150 = sadd.s32 %s149, 1
      %s151 = scalar_select %p148, %s149, %s150
      %p154 = pneg %p148
      %p155 = scmp.eq.s32.totalorder %s13, 1
      %p156 = por %p154, %p155
      %p157 = scmp.ne.s32.totalorder %s149, %s152
      %p158 = scmp.eq.s32.totalorder %s13, 0
      %p159 = por %p157, %p158
      %p160 = scmp.ne.s32.totalorder %s149, %s152
      %p161 = scmp.eq.s32.totalorder %s18, 1
      %p162 = por %p160, %p161
      %p163 = scmp.ne.s32.totalorder %s152, %s153
      %p164 = scmp.eq.s32.totalorder %s18, 0
      %p165 = por %p163, %p164
      %p166 = scmp.ne.s32.totalorder %s152, %s153
      %p167 = scmp.eq.s32.totalorder %s19, 1
      %p168 = por %p166, %p167
      %p170 = scmp.ne.s32.totalorder %s153, %s169
      %p171 = scmp.eq.s32.totalorder %s19, 0
      %p172 = por %p170, %p171
      %p173 = scmp.le.s32.totalorder 1, %s13
      %p174 = scmp.lt.s32.totalorder %s13, 3
      %p175 = pnand %p173, %p174
      %p176 = pneg %p175
      // Predicated region
      $region9: #{memory_efficient_attention.3} parent=5 // pred_check
        _
      $region10: #{memory_efficient_attention.3} parent=5 // pred_check_branch
        %178 = sbr.rel (%p175) target = $region12
      $region11: #{memory_efficient_attention.3} parent=5 // pred_region
        %s179 = ssub.s32 %s13, 1
        // Predicated region
        $region13: #{memory_efficient_attention.3} parent=11 // pred_check
          %p180 = pneg %p137
        $region14: #{memory_efficient_attention.3} parent=11 // pred_check_branch
          %182 = sbr.rel (%p180) target = $region16
        $region15: #{memory_efficient_attention.3} parent=11 // pred_region
          _
        $region16: #{memory_efficient_attention.3} parent=11 // pred_fallthru
          _
      $region12: #{memory_efficient_attention.3} parent=5 // pred_fallthru
        _
      %p183 = scmp.lt.s32.totalorder %s13, 2
      // Predicated region
      $region17: #{memory_efficient_attention.3} parent=5 // pred_check
        %p184 = pneg %p183
      $region18: #{memory_efficient_attention.3} parent=5 // pred_check_branch
        %186 = sbr.rel (%p184) target = $region20
      $region19: #{memory_efficient_attention.3} parent=5 // pred_region
        // Predicated region
        $region21: #{memory_efficient_attention.3} parent=19 // pred_check
          %p187 = pneg %p54
        $region22: #{memory_efficient_attention.3} parent=19 // pred_check_branch
          %189 = sbr.rel (%p187) target = $region24
        $region23: #{memory_efficient_attention.3} parent=19 // pred_region
          %p190 = scmp.lt.s32.totalorder %s20, 1
          %s191 = scalar_select %p190, %s20, 1
          %p192 = scmp.lt.s32.totalorder %s21, 0
          %s193 = scalar_select %p192, %s21, 0
          %s194 = sadd.s32 %s193, %s191
          %s195 = smul.addr %s194, 4
          %s196 = scalar_lea.vmem %s0, %s195
        $region24: #{memory_efficient_attention.3} parent=19 // pred_fallthru
          _
        // Predicated region
        $region25: #{memory_efficient_attention.3} parent=19 // pred_check
          %p197 = pneg %p82
        $region26: #{memory_efficient_attention.3} parent=19 // pred_check_branch
          %199 = sbr.rel (%p197) target = $region28
        $region27: #{memory_efficient_attention.3} parent=19 // pred_region
          %p200 = scmp.lt.s32.totalorder %s20, 1
          %s201 = scalar_select %p200, %s20, 1
          %p202 = scmp.lt.s32.totalorder %s22, 0
          %s203 = scalar_select %p202, %s22, 0
          %s204 = sadd.s32 %s203, %s201
          %s205 = smul.addr %s204, 4
          %s206 = scalar_lea.vmem %s1, %s205
        $region28: #{memory_efficient_attention.3} parent=19 // pred_fallthru
          _
        // Predicated region
        $region29: #{memory_efficient_attention.3} parent=19 // pred_check
          %p207 = pneg %p110
        $region30: #{memory_efficient_attention.3} parent=19 // pred_check_branch
          %209 = sbr.rel (%p207) target = $region32
        $region31: #{memory_efficient_attention.3} parent=19 // pred_region
          %p210 = scmp.lt.s32.totalorder %s20, 1
          %s211 = scalar_select %p210, %s20, 1
          %p212 = scmp.lt.s32.totalorder %s22, 0
          %s213 = scalar_select %p212, %s22, 0
          %s214 = sadd.s32 %s213, %s211
          %s215 = smul.addr %s214, 4
          %s216 = scalar_lea.vmem %s2, %s215
        $region32: #{memory_efficient_attention.3} parent=19 // pred_fallthru
          _
      $region20: #{memory_efficient_attention.3} parent=5 // pred_fallthru
        _
      %p217 = scmp.le.s32.totalorder 1, %s13
      %p218 = scmp.lt.s32.totalorder %s13, 3
      %p219 = pnand %p217, %p218
      %p220 = pneg %p219
      // Predicated region
      $region33: #{memory_efficient_attention.3} parent=5 // pred_check
        _
      $region34: #{memory_efficient_attention.3} parent=5 // pred_check_branch
        %222 = sbr.rel (%p219) target = $region36
      $region35: #{memory_efficient_attention.3} parent=5 // pred_region
        %s223 = ssub.s32 %s13, 1
        %p224 = scmp.lt.s32.totalorder %s23, 1
        %s225 = scalar_select %p224, %s23, 1
        %p226 = scmp.lt.s32.totalorder %s24, 0
        %s227 = scalar_select %p226, %s24, 0
        %s228 = sadd.s32 %s227, %s225
        %s229 = smul.addr %s228, 4
        %s230 = scalar_lea.vmem %s0, %s229
        %p231 = pneg %p60
        %p232 = pneg %p57
        %p233 = scmp.lt.s32.totalorder %s23, 1
        %s234 = scalar_select %p233, %s23, 1
        %p235 = scmp.lt.s32.totalorder %s25, 0
        %s236 = scalar_select %p235, %s25, 0
        %s237 = sadd.s32 %s236, %s234
        %s238 = smul.addr %s237, 4
        %s239 = scalar_lea.vmem %s1, %s238
        %p240 = pneg %p88
        %p241 = pneg %p85
        %p242 = scmp.lt.s32.totalorder %s23, 1
        %s243 = scalar_select %p242, %s23, 1
        %p244 = scmp.lt.s32.totalorder %s25, 0
        %s245 = scalar_select %p244, %s25, 0
        %s246 = sadd.s32 %s245, %s243
        %s247 = smul.addr %s246, 4
        %s248 = scalar_lea.vmem %s2, %s247
        %p249 = pneg %p116
        %p250 = pneg %p113
        %p251 = pneg %p137
        %p252 = pneg %p134
        %p253 = pneg %p165
        %p254 = pneg %p162
        %s255 = sand.u32 %s152, 1
        %s256 = scalar_lea.sflag [#allocation6], %s255
        %s257 = sand.u32 %s152, 1
        %s258 = smul.addr %s257, 8
        %s259 = scalar_lea.vmem [#allocation5], %s258
        %p260 = scmp.lt.s32.totalorder %s23, 1
        %s261 = scalar_select %p260, %s23, 1
        %p262 = scmp.lt.s32.totalorder %s24, 0
        %s263 = scalar_select %p262, %s24, 0
        %s264 = sadd.s32 %s263, %s261
        %s265 = smul.addr %s264, 4
        %s266 = scalar_lea.vmem %s0, %s265
        %p267 = scmp.lt.s32.totalorder %s23, 1
        %s268 = scalar_select %p267, %s23, 1
        %p269 = scmp.lt.s32.totalorder %s25, 0
        %s270 = scalar_select %p269, %s25, 0
        %s271 = sadd.s32 %s270, %s268
        %s272 = smul.addr %s271, 4
        %s273 = scalar_lea.vmem %s1, %s272
        %p274 = scmp.lt.s32.totalorder %s23, 1
        %s275 = scalar_select %p274, %s23, 1
        %p276 = scmp.lt.s32.totalorder %s25, 0
        %s277 = scalar_select %p276, %s25, 0
        %s278 = sadd.s32 %s277, %s275
        %s279 = smul.addr %s278, 4
        %s280 = scalar_lea.vmem %s2, %s279
        %p282 = scmp.eq.s32.totalorder %s25, 0
        // Predicated region
        $region37: #{memory_efficient_attention.3} parent=35 // pred_check
          %p283 = pneg %p282
        $region38: #{memory_efficient_attention.3} parent=35 // pred_check_branch
          %285 = sbr.rel (%p283) target = $region40
        $region39: #{memory_efficient_attention.3} parent=35 // pred_region
          %vm286 = vcmask 64512
          %287 = vst.msk [vmem:[#allocation2] sm:$0xff] %vm286, -inf
          %288 = vst.msk [vmem:[#allocation3] sm:$0xff] %vm286, 0.0
          %vm289 = vcmask 261120
          %290 = vst.msk [vmem:[#allocation4] sm:$0xff] %vm289, 0.0
        $region40: #{memory_efficient_attention.3} parent=35 // pred_fallthru
          _
        %v291 = vld [vmem:[%s266] sm:$0xf]
        %v292 = vld [vmem:[%s273] sm:$0xf]
        %v293 = vld [vmem:[%s280] sm:$0xf]
        %v294 = vld [vmem:[#allocation2] sm:$0xff]
        %v295 = vld [vmem:[#allocation3] sm:$0xff]
        %vm296 = vcmask 31744
        %v298 = vsel %vm296, %v291, 0
        %v301 = vsel %vm296, %v292, 0
        %303 = vmatpush.bf16.xpose.msra.mxu0 0
        %304 = vmatpush.bf16.xpose.msra.mxu0 0
        %305 = vmatpush.bf16.xpose.msra.mxu0 0
        %306 = vmatpush.bf16.xpose.msra.mxu0 0
        %307 = vmatpush.bf16.xpose.msra.mxu0 0
        %308 = vmatpush.bf16.xpose.msra.mxu0 0
        %309 = vmatpush.bf16.xpose.msra.mxu0 0
        %310 = vmatpush.bf16.xpose.msra.mxu0 %v301
        %311 = vmatmul.bf16.gmra.mxu0 %v298
        %v312 = vpop.f32.mrf.mxu0
        %v313 = vadd.f32 0.0, %v312
        %v314 = vpop.f32.mrf.mxu0
        %315 = vdwg.mxu0
        %vm316 = vcmask 64512
        %v317 = vsel %vm316, %v313, -inf
        %318 = vmax.xlane.f32.xlu0 %v317
        %v319 = vpop.xlane.xlu0 %318
        %v320 = vmax.f32 %v294, %v319
        %v321 = vsub.f32 %v294, %v320
        %v322 = vmul.f32 %v321, 1.442695
        %v323 = vpow.pop %v322
        %325 = vset.pattern.permute.xlu0 0
        %326 = vperm.xlu0 %325, %v320
        %v327 = vpop.permute.xlu0 %326
        %v329 = vsub.f32 %v313, %v327
        %v330 = vmul.f32 %v329, 1.442695
        %v331 = vpow.pop %v330
        %v332 = vmul.f32 %v323, %v295
        %v333 = vsel %vm316, %v331, 0.0
        %334 = vadd.xlane.f32.xlu0 %v333
        %v335 = vpop.xlane.xlu0 %334
        %v336 = vadd.f32 %v332, %v335
        %v337 = vpack.c.bf16 %v331, %v331
        %v339 = vsel %vm316, %v337, 0
        %vm341 = vcmask 1043456
        %v343 = vsel %vm341, %v293, 0
        %345 = vmatpush.bf16.msra.mxu0 0
        %346 = vmatpush.bf16.msra.mxu0 0
        %347 = vmatpush.bf16.msra.mxu0 0
        %348 = vmatpush.bf16.msra.mxu0 0
        %349 = vmatpush.bf16.msra.mxu0 0
        %350 = vmatpush.bf16.msra.mxu0 0
        %351 = vmatpush.bf16.msra.mxu0 0
        %352 = vmatpush.bf16.msra.mxu0 %v343
        %353 = vmatmul.bf16.gmra.mxu0 %v339
        %v354 = vpop.f32.mrf.mxu0
        %v355 = vadd.f32 0.0, %v354
        %v356 = vpop.f32.mrf.mxu0
        %357 = vdwg.mxu0
        %359 = vset.pattern.permute.xlu0 0
        %360 = vperm.xlu0 %359, %v323
        %v361 = vpop.permute.xlu0 %360
        %v364 = vunpack.c.l.b16 %v291
        %v365 = vpack.c.b16 %v364, %v364
        %366 = vrot.lane.b32.xlu0 %v365, 124
        %v367 = vpop.permute.xlu0 %366
        %v369 = vunpack.c.l.b16 %v292
        %v370 = vpack.c.b16 %v369, %v369
        %371 = vrot.lane.b32.xlu0 %v370, 124
        %v372 = vpop.permute.xlu0 %371
        %v374 = vsel %vm296, %v367, 0
        %v377 = vsel %vm296, %v372, 0
        %379 = vmatpush.bf16.xpose.msra.mxu0 0
        %380 = vmatpush.bf16.xpose.msra.mxu0 0
        %381 = vmatpush.bf16.xpose.msra.mxu0 0
        %382 = vmatpush.bf16.xpose.msra.mxu0 0
        %383 = vmatpush.bf16.xpose.msra.mxu0 0
        %384 = vmatpush.bf16.xpose.msra.mxu0 0
        %385 = vmatpush.bf16.xpose.msra.mxu0 0
        %386 = vmatpush.bf16.xpose.msra.mxu0 %v377
        %387 = vmatmul.bf16.gmra.mxu0 %v374
        %v388 = vpop.f32.mrf.mxu0
        %v389 = vadd.f32 0.0, %v388
        %v390 = vpop.f32.mrf.mxu0
        %391 = vdwg.mxu0
        %v392 = vsel %vm316, %v389, -inf
        %393 = vmax.xlane.f32.xlu0 %v392
        %v394 = vpop.xlane.xlu0 %393
        %v395 = vmax.f32 %v294, %v394
        %v396 = vsub.f32 %v294, %v395
        %v397 = vmul.f32 %v396, 1.442695
        %v398 = vpow.pop %v397
        %400 = vset.pattern.permute.xlu0 1
        %401 = vperm.xlu0 %400, %v395
        %v402 = vpop.permute.xlu0 %401
        %v404 = vsub.f32 %v389, %v402
        %v405 = vmul.f32 %v404, 1.442695
        %v406 = vpow.pop %v405
        %v407 = vmul.f32 %v398, %v295
        %v408 = vsel %vm316, %v406, 0.0
        %409 = vadd.xlane.f32.xlu0 %v408
        %v410 = vpop.xlane.xlu0 %409
        %v411 = vadd.f32 %v407, %v410
        %v412 = vpack.c.bf16 %v406, %v406
        %v414 = vunpack.c.l.b16 %v293
        %v415 = vpack.c.b16 %v414, %v414
        %416 = vrot.lane.b32.xlu0 %v415, 124
        %v417 = vpop.permute.xlu0 %416
        %v419 = vsel %vm316, %v412, 0
        %v422 = vsel %vm341, %v417, 0
        %424 = vmatpush.bf16.msra.mxu0 0
        %425 = vmatpush.bf16.msra.mxu0 0
        %426 = vmatpush.bf16.msra.mxu0 0
        %427 = vmatpush.bf16.msra.mxu0 0
        %428 = vmatpush.bf16.msra.mxu0 0
        %429 = vmatpush.bf16.msra.mxu0 0
        %430 = vmatpush.bf16.msra.mxu0 0
        %431 = vmatpush.bf16.msra.mxu0 %v422
        %432 = vmatmul.bf16.gmra.mxu0 %v419
        %v433 = vpop.f32.mrf.mxu0
        %v434 = vadd.f32 0.0, %v433
        %v435 = vpop.f32.mrf.mxu0
        %436 = vdwg.mxu0
        %438 = vset.pattern.permute.xlu0 1
        %439 = vperm.xlu0 %438, %v398
        %v440 = vpop.permute.xlu0 %439
        %442 = vrot.lane.b32.xlu0 %v365, 120
        %v443 = vpop.permute.xlu0 %442
        %444 = vrot.lane.b32.xlu0 %v370, 120
        %v445 = vpop.permute.xlu0 %444
        %v447 = vsel %vm296, %v443, 0
        %v450 = vsel %vm296, %v445, 0
        %452 = vmatpush.bf16.xpose.msra.mxu0 0
        %453 = vmatpush.bf16.xpose.msra.mxu0 0
        %454 = vmatpush.bf16.xpose.msra.mxu0 0
        %455 = vmatpush.bf16.xpose.msra.mxu0 0
        %456 = vmatpush.bf16.xpose.msra.mxu0 0
        %457 = vmatpush.bf16.xpose.msra.mxu0 0
        %458 = vmatpush.bf16.xpose.msra.mxu0 0
        %459 = vmatpush.bf16.xpose.msra.mxu0 %v450
        %460 = vmatmul.bf16.gmra.mxu0 %v447
        %v461 = vpop.f32.mrf.mxu0
        %v462 = vadd.f32 0.0, %v461
        %v463 = vpop.f32.mrf.mxu0
        %464 = vdwg.mxu0
        %v465 = vsel %vm316, %v462, -inf
        %466 = vmax.xlane.f32.xlu0 %v465
        %v467 = vpop.xlane.xlu0 %466
        %v468 = vmax.f32 %v294, %v467
        %v469 = vsub.f32 %v294, %v468
        %v470 = vmul.f32 %v469, 1.442695
        %v471 = vpow.pop %v470
        %473 = vset.pattern.permute.xlu0 2
        %474 = vperm.xlu0 %473, %v468
        %v475 = vpop.permute.xlu0 %474
        %v477 = vsub.f32 %v462, %v475
        %v478 = vmul.f32 %v477, 1.442695
        %v479 = vpow.pop %v478
        %v480 = vmul.f32 %v471, %v295
        %v481 = vsel %vm316, %v479, 0.0
        %482 = vadd.xlane.f32.xlu0 %v481
        %v483 = vpop.xlane.xlu0 %482
        %v484 = vadd.f32 %v480, %v483
        %v485 = vpack.c.bf16 %v479, %v479
        %486 = vrot.lane.b32.xlu0 %v415, 120
        %v487 = vpop.permute.xlu0 %486
        %v489 = vsel %vm316, %v485, 0
        %v492 = vsel %vm341, %v487, 0
        %494 = vmatpush.bf16.msra.mxu0 0
        %495 = vmatpush.bf16.msra.mxu0 0
        %496 = vmatpush.bf16.msra.mxu0 0
        %497 = vmatpush.bf16.msra.mxu0 0
        %498 = vmatpush.bf16.msra.mxu0 0
        %499 = vmatpush.bf16.msra.mxu0 0
        %500 = vmatpush.bf16.msra.mxu0 0
        %501 = vmatpush.bf16.msra.mxu0 %v492
        %502 = vmatmul.bf16.gmra.mxu0 %v489
        %v503 = vpop.f32.mrf.mxu0
        %v504 = vadd.f32 0.0, %v503
        %v505 = vpop.f32.mrf.mxu0
        %506 = vdwg.mxu0
        %508 = vset.pattern.permute.xlu0 2
        %509 = vperm.xlu0 %508, %v471
        %v510 = vpop.permute.xlu0 %509
        %512 = vrot.lane.b32.xlu0 %v365, 116
        %v513 = vpop.permute.xlu0 %512
        %514 = vrot.lane.b32.xlu0 %v370, 116
        %v515 = vpop.permute.xlu0 %514
        %v517 = vsel %vm296, %v513, 0
        %v520 = vsel %vm296, %v515, 0
        %522 = vmatpush.bf16.xpose.msra.mxu0 0
        %523 = vmatpush.bf16.xpose.msra.mxu0 0
        %524 = vmatpush.bf16.xpose.msra.mxu0 0
        %525 = vmatpush.bf16.xpose.msra.mxu0 0
        %526 = vmatpush.bf16.xpose.msra.mxu0 0
        %527 = vmatpush.bf16.xpose.msra.mxu0 0
        %528 = vmatpush.bf16.xpose.msra.mxu0 0
        %529 = vmatpush.bf16.xpose.msra.mxu0 %v520
        %530 = vmatmul.bf16.gmra.mxu0 %v517
        %v531 = vpop.f32.mrf.mxu0
        %v532 = vadd.f32 0.0, %v531
        %v533 = vpop.f32.mrf.mxu0
        %534 = vdwg.mxu0
        %v535 = vsel %vm316, %v532, -inf
        %536 = vmax.xlane.f32.xlu0 %v535
        %v537 = vpop.xlane.xlu0 %536
        %v538 = vmax.f32 %v294, %v537
        %v539 = vsub.f32 %v294, %v538
        %v540 = vmul.f32 %v539, 1.442695
        %v541 = vpow.pop %v540
        %543 = vset.pattern.permute.xlu0 3
        %544 = vperm.xlu0 %543, %v538
        %v545 = vpop.permute.xlu0 %544
        %v547 = vsub.f32 %v532, %v545
        %v548 = vmul.f32 %v547, 1.442695
        %v549 = vpow.pop %v548
        %v550 = vmul.f32 %v541, %v295
        %v551 = vsel %vm316, %v549, 0.0
        %552 = vadd.xlane.f32.xlu0 %v551
        %v553 = vpop.xlane.xlu0 %552
        %v554 = vadd.f32 %v550, %v553
        %v555 = vpack.c.bf16 %v549, %v549
        %556 = vrot.lane.b32.xlu0 %v415, 116
        %v557 = vpop.permute.xlu0 %556
        %v559 = vsel %vm316, %v555, 0
        %v562 = vsel %vm341, %v557, 0
        %564 = vmatpush.bf16.msra.mxu0 0
        %565 = vmatpush.bf16.msra.mxu0 0
        %566 = vmatpush.bf16.msra.mxu0 0
        %567 = vmatpush.bf16.msra.mxu0 0
        %568 = vmatpush.bf16.msra.mxu0 0
        %569 = vmatpush.bf16.msra.mxu0 0
        %570 = vmatpush.bf16.msra.mxu0 0
        %571 = vmatpush.bf16.msra.mxu0 %v562
        %572 = vmatmul.bf16.gmra.mxu0 %v559
        %v573 = vpop.f32.mrf.mxu0
        %v574 = vadd.f32 0.0, %v573
        %v575 = vpop.f32.mrf.mxu0
        %576 = vdwg.mxu0
        %578 = vset.pattern.permute.xlu0 3
        %579 = vperm.xlu0 %578, %v541
        %v580 = vpop.permute.xlu0 %579
        %582 = vrot.lane.b32.xlu0 %v365, 112
        %v583 = vpop.permute.xlu0 %582
        %584 = vrot.lane.b32.xlu0 %v370, 112
        %v585 = vpop.permute.xlu0 %584
        %v587 = vsel %vm296, %v583, 0
        %v590 = vsel %vm296, %v585, 0
        %592 = vmatpush.bf16.xpose.msra.mxu0 0
        %593 = vmatpush.bf16.xpose.msra.mxu0 0
        %594 = vmatpush.bf16.xpose.msra.mxu0 0
        %595 = vmatpush.bf16.xpose.msra.mxu0 0
        %596 = vmatpush.bf16.xpose.msra.mxu0 0
        %597 = vmatpush.bf16.xpose.msra.mxu0 0
        %598 = vmatpush.bf16.xpose.msra.mxu0 0
        %599 = vmatpush.bf16.xpose.msra.mxu0 %v590
        %600 = vmatmul.bf16.gmra.mxu0 %v587
        %v601 = vpop.f32.mrf.mxu0
        %v602 = vadd.f32 0.0, %v601
        %v603 = vpop.f32.mrf.mxu0
        %604 = vdwg.mxu0
        %v605 = vsel %vm316, %v602, -inf
        %606 = vmax.xlane.f32.xlu0 %v605
        %v607 = vpop.xlane.xlu0 %606
        %v608 = vmax.f32 %v294, %v607
        %v609 = vsub.f32 %v294, %v608
        %v610 = vmul.f32 %v609, 1.442695
        %v611 = vpow.pop %v610
        %613 = vset.pattern.permute.xlu0 4
        %614 = vperm.xlu0 %613, %v608
        %v615 = vpop.permute.xlu0 %614
        %v617 = vsub.f32 %v602, %v615
        %v618 = vmul.f32 %v617, 1.442695
        %v619 = vpow.pop %v618
        %v620 = vmul.f32 %v611, %v295
        %v621 = vsel %vm316, %v619, 0.0
        %622 = vadd.xlane.f32.xlu0 %v621
        %v623 = vpop.xlane.xlu0 %622
        %v624 = vadd.f32 %v620, %v623
        %v625 = vpack.c.bf16 %v619, %v619
        %626 = vrot.lane.b32.xlu0 %v415, 112
        %v627 = vpop.permute.xlu0 %626
        %v629 = vsel %vm316, %v625, 0
        %v632 = vsel %vm341, %v627, 0
        %634 = vmatpush.bf16.msra.mxu0 0
        %635 = vmatpush.bf16.msra.mxu0 0
        %636 = vmatpush.bf16.msra.mxu0 0
        %637 = vmatpush.bf16.msra.mxu0 0
        %638 = vmatpush.bf16.msra.mxu0 0
        %639 = vmatpush.bf16.msra.mxu0 0
        %640 = vmatpush.bf16.msra.mxu0 0
        %641 = vmatpush.bf16.msra.mxu0 %v632
        %642 = vmatmul.bf16.gmra.mxu0 %v629
        %v643 = vpop.f32.mrf.mxu0
        %v644 = vadd.f32 0.0, %v643
        %v645 = vpop.f32.mrf.mxu0
        %646 = vdwg.mxu0
        %648 = vset.pattern.permute.xlu0 4
        %649 = vperm.xlu0 %648, %v611
        %v650 = vpop.permute.xlu0 %649
        %652 = vrot.lane.b32.xlu0 %v365, 108
        %v653 = vpop.permute.xlu0 %652
        %654 = vrot.lane.b32.xlu0 %v370, 108
        %v655 = vpop.permute.xlu0 %654
        %v657 = vsel %vm296, %v653, 0
        %v660 = vsel %vm296, %v655, 0
        %662 = vmatpush.bf16.xpose.msra.mxu0 0
        %663 = vmatpush.bf16.xpose.msra.mxu0 0
        %664 = vmatpush.bf16.xpose.msra.mxu0 0
        %665 = vmatpush.bf16.xpose.msra.mxu0 0
        %666 = vmatpush.bf16.xpose.msra.mxu0 0
        %667 = vmatpush.bf16.xpose.msra.mxu0 0
        %668 = vmatpush.bf16.xpose.msra.mxu0 0
        %669 = vmatpush.bf16.xpose.msra.mxu0 %v660
        %670 = vmatmul.bf16.gmra.mxu0 %v657
        %v671 = vpop.f32.mrf.mxu0
        %v672 = vadd.f32 0.0, %v671
        %v673 = vpop.f32.mrf.mxu0
        %674 = vdwg.mxu0
        %v675 = vsel %vm316, %v672, -inf
        %676 = vmax.xlane.f32.xlu0 %v675
        %v677 = vpop.xlane.xlu0 %676
        %v678 = vmax.f32 %v294, %v677
        %v679 = vsub.f32 %v294, %v678
        %v680 = vmul.f32 %v679, 1.442695
        %v681 = vpow.pop %v680
        %683 = vset.pattern.permute.xlu0 5
        %684 = vperm.xlu0 %683, %v678
        %v685 = vpop.permute.xlu0 %684
        %v687 = vsub.f32 %v672, %v685
        %v688 = vmul.f32 %v687, 1.442695
        %v689 = vpow.pop %v688
        %v690 = vmul.f32 %v681, %v295
        %v691 = vsel %vm316, %v689, 0.0
        %692 = vadd.xlane.f32.xlu0 %v691
        %v693 = vpop.xlane.xlu0 %692
        %v694 = vadd.f32 %v690, %v693
        %v695 = vpack.c.bf16 %v689, %v689
        %696 = vrot.lane.b32.xlu0 %v415, 108
        %v697 = vpop.permute.xlu0 %696
        %v699 = vsel %vm316, %v695, 0
        %v702 = vsel %vm341, %v697, 0
        %704 = vmatpush.bf16.msra.mxu0 0
        %705 = vmatpush.bf16.msra.mxu0 0
        %706 = vmatpush.bf16.msra.mxu0 0
        %707 = vmatpush.bf16.msra.mxu0 0
        %708 = vmatpush.bf16.msra.mxu0 0
        %709 = vmatpush.bf16.msra.mxu0 0
        %710 = vmatpush.bf16.msra.mxu0 0
        %711 = vmatpush.bf16.msra.mxu0 %v702
        %712 = vmatmul.bf16.gmra.mxu0 %v699
        %v713 = vpop.f32.mrf.mxu0
        %v714 = vadd.f32 0.0, %v713
        %v715 = vpop.f32.mrf.mxu0
        %716 = vdwg.mxu0
        %718 = vset.pattern.permute.xlu0 5
        %719 = vperm.xlu0 %718, %v681
        %v720 = vpop.permute.xlu0 %719
        %722 = vrot.lane.b32.xlu0 %v365, 104
        %v723 = vpop.permute.xlu0 %722
        %724 = vrot.lane.b32.xlu0 %v370, 104
        %v725 = vpop.permute.xlu0 %724
        %v727 = vsel %vm296, %v723, 0
        %v730 = vsel %vm296, %v725, 0
        %732 = vmatpush.bf16.xpose.msra.mxu0 0
        %733 = vmatpush.bf16.xpose.msra.mxu0 0
        %734 = vmatpush.bf16.xpose.msra.mxu0 0
        %735 = vmatpush.bf16.xpose.msra.mxu0 0
        %736 = vmatpush.bf16.xpose.msra.mxu0 0
        %737 = vmatpush.bf16.xpose.msra.mxu0 0
        %738 = vmatpush.bf16.xpose.msra.mxu0 0
        %739 = vmatpush.bf16.xpose.msra.mxu0 %v730
        %740 = vmatmul.bf16.gmra.mxu0 %v727
        %v741 = vpop.f32.mrf.mxu0
        %v742 = vadd.f32 0.0, %v741
        %v743 = vpop.f32.mrf.mxu0
        %744 = vdwg.mxu0
        %v745 = vsel %vm316, %v742, -inf
        %746 = vmax.xlane.f32.xlu0 %v745
        %v747 = vpop.xlane.xlu0 %746
        %v748 = vmax.f32 %v294, %v747
        %v749 = vsub.f32 %v294, %v748
        %v750 = vmul.f32 %v749, 1.442695
        %v751 = vpow.pop %v750
        %753 = vset.pattern.permute.xlu0 6
        %754 = vperm.xlu0 %753, %v748
        %v755 = vpop.permute.xlu0 %754
        %v757 = vsub.f32 %v742, %v755
        %v758 = vmul.f32 %v757, 1.442695
        %v759 = vpow.pop %v758
        %v760 = vmul.f32 %v751, %v295
        %v761 = vsel %vm316, %v759, 0.0
        %762 = vadd.xlane.f32.xlu0 %v761
        %v763 = vpop.xlane.xlu0 %762
        %v764 = vadd.f32 %v760, %v763
        %v765 = vpack.c.bf16 %v759, %v759
        %766 = vrot.lane.b32.xlu0 %v415, 104
        %v767 = vpop.permute.xlu0 %766
        %v769 = vsel %vm316, %v765, 0
        %v772 = vsel %vm341, %v767, 0
        %774 = vmatpush.bf16.msra.mxu0 0
        %775 = vmatpush.bf16.msra.mxu0 0
        %776 = vmatpush.bf16.msra.mxu0 0
        %777 = vmatpush.bf16.msra.mxu0 0
        %778 = vmatpush.bf16.msra.mxu0 0
        %779 = vmatpush.bf16.msra.mxu0 0
        %780 = vmatpush.bf16.msra.mxu0 0
        %781 = vmatpush.bf16.msra.mxu0 %v772
        %782 = vmatmul.bf16.gmra.mxu0 %v769
        %v783 = vpop.f32.mrf.mxu0
        %v784 = vadd.f32 0.0, %v783
        %v785 = vpop.f32.mrf.mxu0
        %786 = vdwg.mxu0
        %788 = vset.pattern.permute.xlu0 6
        %789 = vperm.xlu0 %788, %v751
        %v790 = vpop.permute.xlu0 %789
        %792 = vrot.lane.b32.xlu0 %v365, 100
        %v793 = vpop.permute.xlu0 %792
        %794 = vrot.lane.b32.xlu0 %v370, 100
        %v795 = vpop.permute.xlu0 %794
        %v797 = vsel %vm296, %v793, 0
        %v800 = vsel %vm296, %v795, 0
        %802 = vmatpush.bf16.xpose.msra.mxu0 0
        %803 = vmatpush.bf16.xpose.msra.mxu0 0
        %804 = vmatpush.bf16.xpose.msra.mxu0 0
        %805 = vmatpush.bf16.xpose.msra.mxu0 0
        %806 = vmatpush.bf16.xpose.msra.mxu0 0
        %807 = vmatpush.bf16.xpose.msra.mxu0 0
        %808 = vmatpush.bf16.xpose.msra.mxu0 0
        %809 = vmatpush.bf16.xpose.msra.mxu0 %v800
        %810 = vmatmul.bf16.gmra.mxu0 %v797
        %v811 = vpop.f32.mrf.mxu0
        %v812 = vadd.f32 0.0, %v811
        %v813 = vpop.f32.mrf.mxu0
        %814 = vdwg.mxu0
        %v815 = vsel %vm316, %v812, -inf
        %816 = vmax.xlane.f32.xlu0 %v815
        %v817 = vpop.xlane.xlu0 %816
        %v818 = vmax.f32 %v294, %v817
        %v819 = vsub.f32 %v294, %v818
        %v820 = vmul.f32 %v819, 1.442695
        %v821 = vpow.pop %v820
        %823 = vset.pattern.permute.xlu0 7
        %824 = vperm.xlu0 %823, %v818
        %v825 = vpop.permute.xlu0 %824
        %v827 = vsub.f32 %v812, %v825
        %v828 = vmul.f32 %v827, 1.442695
        %v829 = vpow.pop %v828
        %v830 = vmul.f32 %v821, %v295
        %v831 = vsel %vm316, %v829, 0.0
        %832 = vadd.xlane.f32.xlu0 %v831
        %v833 = vpop.xlane.xlu0 %832
        %v834 = vadd.f32 %v830, %v833
        %v835 = vpack.c.bf16 %v829, %v829
        %836 = vrot.lane.b32.xlu0 %v415, 100
        %v837 = vpop.permute.xlu0 %836
        %v839 = vsel %vm316, %v835, 0
        %v842 = vsel %vm341, %v837, 0
        %844 = vmatpush.bf16.msra.mxu0 0
        %845 = vmatpush.bf16.msra.mxu0 0
        %846 = vmatpush.bf16.msra.mxu0 0
        %847 = vmatpush.bf16.msra.mxu0 0
        %848 = vmatpush.bf16.msra.mxu0 0
        %849 = vmatpush.bf16.msra.mxu0 0
        %850 = vmatpush.bf16.msra.mxu0 0
        %851 = vmatpush.bf16.msra.mxu0 %v842
        %852 = vmatmul.bf16.gmra.mxu0 %v839
        %v853 = vpop.f32.mrf.mxu0
        %v854 = vadd.f32 0.0, %v853
        %v855 = vpop.f32.mrf.mxu0
        %856 = vdwg.mxu0
        %858 = vset.pattern.permute.xlu0 7
        %859 = vperm.xlu0 %858, %v821
        %v860 = vpop.permute.xlu0 %859
        %863 = vrot.lane.b32.xlu0 %v434, 4
        %v864 = vpop.permute.xlu0 %863
        %867 = vrot.lane.b32.xlu0 %v504, 8
        %v868 = vpop.permute.xlu0 %867
        %871 = vrot.lane.b32.xlu0 %v574, 12
        %v872 = vpop.permute.xlu0 %871
        %875 = vrot.lane.b32.xlu0 %v644, 16
        %v876 = vpop.permute.xlu0 %875
        %879 = vrot.lane.b32.xlu0 %v714, 20
        %v880 = vpop.permute.xlu0 %879
        %883 = vrot.lane.b32.xlu0 %v784, 24
        %v884 = vpop.permute.xlu0 %883
        %887 = vrot.lane.b32.xlu0 %v854, 28
        %v888 = vpop.permute.xlu0 %887
        %v890 = vsel %vm296, %v355, %v864
        %v891 = vsel %vm316, %v890, %v868
        %vm892 = vcmask 97280
        %v893 = vsel %vm892, %v891, %v872
        %vm894 = vcmask 130048
        %v895 = vsel %vm894, %v893, %v876
        %vm896 = vcmask 162816
        %v897 = vsel %vm896, %v895, %v880
        %vm898 = vcmask 195584
        %v899 = vsel %vm898, %v897, %v884
        %vm900 = vcmask 228352
        %v901 = vsel %vm900, %v899, %v888
        %v902 = vsel %vm296, %v361, %v440
        %v903 = vsel %vm316, %v902, %v510
        %v904 = vsel %vm892, %v903, %v580
        %v905 = vsel %vm894, %v904, %v650
        %v906 = vsel %vm896, %v905, %v720
        %v907 = vsel %vm898, %v906, %v790
        %v908 = vsel %vm900, %v907, %v860
        %v909 = vld [vmem:[#allocation4] sm:$0xff]
        %v910 = vmul.f32 %v908, %v909
        %v911 = vadd.f32 %v910, %v901
        %vm912 = vcmask 261120
        %913 = vst.msk [vmem:[#allocation4] sm:$0xff] %vm912, %v911
        %vm914 = vcmask 7168
        %v915 = vsel %vm914, %v320, %v395
        %vm916 = vcmask 15360
        %v917 = vsel %vm916, %v915, %v468
        %vm918 = vcmask 23552
        %v919 = vsel %vm918, %v917, %v538
        %v920 = vsel %vm296, %v919, %v608
        %vm921 = vcmask 39936
        %v922 = vsel %vm921, %v920, %v678
        %vm923 = vcmask 48128
        %v924 = vsel %vm923, %v922, %v748
        %vm925 = vcmask 56320
        %v926 = vsel %vm925, %v924, %v818
        %927 = vst.msk [vmem:[#allocation2] sm:$0xff] %vm316, %v926
        %v928 = vsel %vm914, %v336, %v411
        %v929 = vsel %vm916, %v928, %v484
        %v930 = vsel %vm918, %v929, %v554
        %v931 = vsel %vm296, %v930, %v624
        %v932 = vsel %vm921, %v931, %v694
        %v933 = vsel %vm923, %v932, %v764
        %v934 = vsel %vm925, %v933, %v834
        %935 = vst.msk [vmem:[#allocation3] sm:$0xff] %vm316, %v934
        // Predicated region
        $region41: #{memory_efficient_attention.3} parent=35 // pred_check
          %p936 = pneg %p282
        $region42: #{memory_efficient_attention.3} parent=35 // pred_check_branch
          %938 = sbr.rel (%p936) target = $region44
        $region43: #{memory_efficient_attention.3} parent=35 // pred_region
          %v939 = vld [vmem:[#allocation3] sm:$0xff]
          %v940 = vrcp.pop %v939
          %v941 = vmul.f32 %v939, %v940
          %v942 = vsub.f32 1.0, %v941
          %v943 = vmul.f32 %v940, %v942
          %v944 = vadd.f32 %v940, %v943
          %vm945 = vweird.f32 %v939
          %vm946 = vweird.f32 %v940
          %vm947 = vmor %vm945, %vm946
          %v948 = vsel %vm947, %v940, %v944
          %v949 = vand.u32 2147483647, %v939
          %vm950 = vcmp.eq.f32.partialorder %v949, 8.507059e+37
          %v951 = vand.u32 %v939, 2147483648
          %v952 = vor.u32 1.1754944e-38, %v951
          %v953 = vsel %vm950, %v952, %v948
          %955 = vset.pattern.permute.xlu0 0
          %956 = vperm.xlu0 %955, %v953
          %v957 = vpop.permute.xlu0 %956
          %959 = vset.pattern.permute.xlu0 1
          %960 = vperm.xlu0 %959, %v953
          %v961 = vpop.permute.xlu0 %960
          %963 = vset.pattern.permute.xlu0 2
          %964 = vperm.xlu0 %963, %v953
          %v965 = vpop.permute.xlu0 %964
          %967 = vset.pattern.permute.xlu0 3
          %968 = vperm.xlu0 %967, %v953
          %v969 = vpop.permute.xlu0 %968
          %971 = vset.pattern.permute.xlu0 4
          %972 = vperm.xlu0 %971, %v953
          %v973 = vpop.permute.xlu0 %972
          %975 = vset.pattern.permute.xlu0 5
          %976 = vperm.xlu0 %975, %v953
          %v977 = vpop.permute.xlu0 %976
          %979 = vset.pattern.permute.xlu0 6
          %980 = vperm.xlu0 %979, %v953
          %v981 = vpop.permute.xlu0 %980
          %983 = vset.pattern.permute.xlu0 7
          %984 = vperm.xlu0 %983, %v953
          %v985 = vpop.permute.xlu0 %984
          %v987 = vsel %vm296, %v957, %v961
          %v988 = vsel %vm316, %v987, %v965
          %v989 = vsel %vm892, %v988, %v969
          %v990 = vsel %vm894, %v989, %v973
          %v991 = vsel %vm896, %v990, %v977
          %v992 = vsel %vm898, %v991, %v981
          %v993 = vsel %vm900, %v992, %v985
          %v994 = vld [vmem:[#allocation4] sm:$0xff]
          %v995 = vmul.f32 %v994, %v993
          %v996 = vpack.c.bf16 %v995, %v995
          %v997 = vld [vmem:[%s3] sm:$0xf]
          %v998 = vld [vmem:[%s3 + $0x4] sm:$0xf]
          %v999 = vld [vmem:[%s3 + $0x8] sm:$0xf]
          %v1000 = vld [vmem:[%s3 + $0xc] sm:$0xf]
          %v1005 = vunpack.c.l.b16 %v997
          %v1006 = vunpack.c.l.b16 %v998
          %v1007 = vunpack.c.l.b16 %v999
          %v1008 = vunpack.c.l.b16 %v1000
          %v1009 = vpack.c.b16 %v1006, %v1005
          %v1010 = vpack.c.b16 %v1008, %v1007
          %v1014 = vsel %vm912, %v996, 0
          %1016 = vmatpush.bf16.msra.mxu0 0
          %1017 = vmatpush.bf16.msra.mxu0 0
          %1018 = vmatpush.bf16.msra.mxu0 0
          %1019 = vmatpush.bf16.msra.mxu0 0
          %1020 = vmatpush.bf16.msra.mxu0 0
          %1021 = vmatpush.bf16.msra.mxu0 0
          %1022 = vmatpush.bf16.msra.mxu0 %v1010
          %1023 = vmatpush.bf16.msra.mxu0 %v1009
          %1024 = vmatmul.bf16.gmra.mxu0 %v1014
          %v1025 = vpop.f32.mrf.mxu0
          %v1026 = vadd.f32 0.0, %v1025
          %v1027 = vpop.f32.mrf.mxu0
          %1028 = vdwg.mxu0
          %1029 = vst.msk [vmem:[%s259] sm:$0xff] %vm912, %v1026
        $region44: #{memory_efficient_attention.3} parent=35 // pred_fallthru
          _
        %s1030 = sand.u32 %s152, 1
        %s1031 = scalar_lea.sflag [#allocation6], %s1030
        %s1032 = sand.u32 %s152, 1
        %s1033 = smul.addr %s1032, 8
        %s1034 = scalar_lea.vmem [#allocation5], %s1033
        // Predicated region
        $region45: #{memory_efficient_attention.3} parent=35 // pred_check
          %p1035 = pneg %p162
        $region46: #{memory_efficient_attention.3} parent=35 // pred_check_branch
          %1037 = sbr.rel (%p1035) target = $region48
        $region47: #{memory_efficient_attention.3} parent=35 // pred_region
          %1039 = vsyncadd %s1031, 0
          %s1040 = sadd.s32 %s24, %s23
          %s1041 = smul.addr %s1040, 8
          %s1042 = scalar_lea.hbm %s4, %s1041
          %s1044 = sshll.u32 %s1034, 4
          %s1045 = int_to_ptr.vmem [resolvable:$true] %s1044
          %s1046 = sshll.u32 %s1042, 4
          %s1047 = int_to_ptr.hbm [resolvable:$true] %s1046
          %1049 = dma.vmem_to_hbm [thread:$0]  %s1045, 128, %s1047, %s1031
        $region48: #{memory_efficient_attention.3} parent=35 // pred_fallthru
          _
      $region36: #{memory_efficient_attention.3} parent=5 // pred_fallthru
        _
      %p1050 = scmp.le.s32.totalorder 2, %s13
      // Predicated region
      $region49: #{memory_efficient_attention.3} parent=5 // pred_check
        %p1051 = pneg %p1050
      $region50: #{memory_efficient_attention.3} parent=5 // pred_check_branch
        %1053 = sbr.rel (%p1051) target = $region52
      $region51: #{memory_efficient_attention.3} parent=5 // pred_region
        %s1054 = ssub.s32 %s13, 2
        // Predicated region
        $region53: #{memory_efficient_attention.3} parent=51 // pred_check
          %p1055 = pneg %p168
        $region54: #{memory_efficient_attention.3} parent=51 // pred_check_branch
          %1057 = sbr.rel (%p1055) target = $region56
        $region55: #{memory_efficient_attention.3} parent=51 // pred_region
          %s1058 = sand.u32 %s153, 1
          %s1059 = scalar_lea.sflag [#allocation6], %s1058
          %s1060 = sand.u32 %s153, 1
          %s1061 = smul.addr %s1060, 8
          %s1062 = scalar_lea.vmem [#allocation5], %s1061
          %1064 = dma.done %s1059, 128
        $region56: #{memory_efficient_attention.3} parent=51 // pred_fallthru
          _
      $region52: #{memory_efficient_attention.3} parent=5 // pred_fallthru
        _
    $region6: #{memory_efficient_attention.3} parent=1 // loop_footer
      %s17 = sadd.s32 1, %s13
    $region7: #{memory_efficient_attention.3} parent=1 // loop_footer_branch
      %12 = sbr.rel target = $region3
    $region8: #{memory_efficient_attention.3} parent=1 // loop_exit
      _
    %1065 = vsyncpa [#allocation6], 1
    %s1066 = scalar_lea.sflag [#allocation6], 1
    %1067 = vsyncpa %s1066, 1

</llo_original>
